<compile_context>
chip_gen: v6e
topology: v6e:2x2x1
jax: 0.10.0
libtpu: 0.0.40
codegen_flags: <defaults>
</compile_context>

<pallas_src>
import math
import jax
import jax.numpy as jnp
from jax.experimental import pallas as pl
from jax.experimental.pallas import tpu as pltpu

TWO_PI = 2.0 * math.pi
HALF_PI = 0.5 * math.pi
_MIN_TILE_ROWS = 256  # below this the ~0.35us per-step overhead dominates


def _round_up(x: int, m: int) -> int:
    return ((x + m - 1) // m) * m


def _num_tensorcores() -> int:
    """Best-effort TensorCore count of the local device (v7x has 2/chip)."""
    try:
        kind = jax.devices()[0].device_kind.lower()
        if "v7" in kind:
            return 2
    except Exception:
        pass
    return 1


def _ff_kernel(x_ref, w_ref, phase_ref, o_ref):
    # x_ref:     (tm, Din)       row tile of the input
    # w_ref:     (Din, C)        resident weight, 2*pi folded in ([W|W] for sincos)
    # phase_ref: (1, C)          constant phase row: 0 on sin lanes, pi/2 on cos lanes
    # o_ref:     (tm, C)         cos(y) == sin(y + pi/2) -> one lane-dense sin + store
    y = jnp.dot(x_ref[...], w_ref[...], preferred_element_type=jnp.float32)
    o_ref[...] = jnp.sin(y + phase_ref[...]).astype(o_ref.dtype)


def _fourier_feature_call(x2d, w_k, phase, *, tm: int, out_dtype):
    n, din = x2d.shape
    din_w, out_cols = w_k.shape
    assert din == din_w, "feature_map second dim must match x feature dim"

    # Keep the dot single-dtype if the activations are not f32 (e.g. bf16 x).
    if x2d.dtype != w_k.dtype:
        w_k = w_k.astype(x2d.dtype)

    # --- row tile selection -------------------------------------------------
    cores = _num_tensorcores()
    tm_eff = min(tm, _round_up(n, 8))
    if cores > 1:
        # >= 2 grid steps per TensorCore so each core overlaps DMA with compute,
        # but only if the resulting tile stays big enough to amortize step cost.
        per_step = _round_up(pl.cdiv(n, 2 * cores), 8)
        if per_step >= _MIN_TILE_ROWS:
            tm_eff = min(tm_eff, per_step)

    grid = (pl.cdiv(n, tm_eff),)  # ragged tail handled by Pallas (no pad/slice)

    out_itemsize = jnp.dtype(out_dtype).itemsize
    cost = pl.CostEstimate(
        flops=2 * n * din * out_cols,
        transcendentals=n * out_cols,
        bytes_accessed=(n * din * x2d.dtype.itemsize
                        + (din + 1) * out_cols * 4
                        + n * out_cols * out_itemsize),
    )

    # NOTE: for cos_only with Dout < 128 the output block is < 128 lanes wide
    # (masked partial stores); acceptable here since Dout equals the full array
    # dim and cos_only is not the hot path.
    return pl.pallas_call(
        _ff_kernel,
        out_shape=jax.ShapeDtypeStruct((n, out_cols), out_dtype),
        grid_spec=pltpu.PrefetchScalarGridSpec(
            num_scalar_prefetch=0,
            grid=grid,
            in_specs=[
                pl.BlockSpec((tm_eff, din), lambda i: (i, 0)),     # row tile of x
                pl.BlockSpec((din, out_cols), lambda i: (0, 0)),   # resident weight
                pl.BlockSpec((1, out_cols), lambda i: (0, 0)),     # resident phase row
            ],
            out_specs=pl.BlockSpec((tm_eff, out_cols), lambda i: (i, 0)),
        ),
        compiler_params=pltpu.CompilerParams(
            dimension_semantics=("parallel",)),
        cost_estimate=cost,
    )(x2d, w_k, phase)


class FourierFeature:
    """Mirrors the PyTorch module: the (static) feature_map is preprocessed once.

    forward(x, cos_only): x (..., infeature) -> (..., 2*outfeature) or
    (..., outfeature) when cos_only.
    """

    def __init__(self, feature_map, *, tm: int = 4096, out_dtype=None):
        fm = jnp.asarray(feature_map, jnp.float32)
        dout, din = fm.shape
        self.din, self.dout = din, dout
        self.tm = tm
        self.out_dtype = out_dtype

        w = (TWO_PI * fm).T                                   # (Din, Dout), 2*pi folded in
        zeros = jnp.zeros((1, dout), jnp.float32)
        half_pi = jnp.full((1, dout), HALF_PI, jnp.float32)
        # Hoisted, computed once per module instance (not per call):
        self._params = {
            False: (jnp.concatenate([w, w], axis=-1),          # [W|W]  (Din, 2*Dout)
                    jnp.concatenate([zeros, half_pi], axis=-1)),  # sin|cos phases
            True: (w, half_pi),                                 # cos-only: sin(y+pi/2)
        }

    def __call__(self, x, cos_only: bool = False):
        assert x.shape[-1] == self.din
        w_k, phase = self._params[bool(cos_only)]
        out_dtype = x.dtype if self.out_dtype is None else self.out_dtype

        lead = x.shape[:-1]
        x2d = x.reshape(-1, self.din)
        out = _fourier_feature_call(x2d, w_k, phase, tm=self.tm, out_dtype=out_dtype)
        return out.reshape(*lead, out.shape[-1])


# Functional convenience wrapper (re-preps the weight every call; prefer the class).
def fourier_feature(x, feature_map, cos_only: bool = False, *, tm: int = 4096):
    return FourierFeature(feature_map, tm=tm)(x, cos_only=cos_only)


if __name__ == "__main__":
    key = jax.random.PRNGKey(0)
    kx, kw = jax.random.split(key)

    sigma = 3.0
    infeature, outfeature = 32, 64
    n = 203  # deliberately NOT a multiple of 8 -> exercises the ragged tail block

    x = jax.random.normal(kx, (n, infeature), dtype=jnp.float32)
    # Deterministic parameter init: N(0, sigma) like torch.normal(0.0, sigma, ...)
    feature_map = sigma * jax.random.normal(kw, (outfeature, infeature),
                                            dtype=jnp.float32)

    ff = FourierFeature(feature_map)
    out = ff(x)                                   # (n, 2*outfeature)
    out_cos = ff(x, cos_only=True)                # (n, outfeature)
    # Small tile -> multi-step grid with a ragged last block, same numerics.
    out_tiled = FourierFeature(feature_map, tm=64)(x)
    jax.block_until_ready((out, out_cos, out_tiled))

    # Reference in plain JAX (module semantics: scale AFTER the matmul).
    y_ref = TWO_PI * jnp.dot(x, feature_map.T, precision=jax.lax.Precision.HIGHEST)
    ref = jnp.concatenate([jnp.sin(y_ref), jnp.cos(y_ref)], axis=-1)

    assert out.shape == (n, 2 * outfeature)
    assert out_cos.shape == (n, outfeature)
    assert out_tiled.shape == (n, 2 * outfeature)
    assert float(jnp.max(jnp.abs(out - ref))) < 3e-4
    assert float(jnp.max(jnp.abs(out_tiled - ref))) < 3e-4
    assert float(jnp.max(jnp.abs(out_cos - jnp.cos(y_ref)))) < 3e-4

    print("KERNEL_OK")
</pallas_src>

<mosaic_0001>
module attributes {stable_mosaic.version = 11 : i64} {
  func.func @_ff_kernel(%arg0: i32, %arg1: memref<208x32xf32, #tpu.memory_space<vmem>>, %arg2: memref<32x128xf32, #tpu.memory_space<vmem>>, %arg3: memref<1x128xf32, #tpu.memory_space<vmem>>, %arg4: memref<208x128xf32, #tpu.memory_space<vmem>>) attributes {dimension_semantics = [#tpu.dimension_semantics<parallel>], iteration_bounds = array<i64: 1>, scalar_prefetch = 0 : i64, scratch_operands = 0 : i64, tpu.core_type = #tpu.core_type<tc>, window_params = [{transform_indices = @transform_0, window_bounds = array<i64: 208, 32>}, {pipeline_mode = #tpu.pipeline_mode<synchronous>, transform_indices = @transform_1, window_bounds = array<i64: 32, 128>}, {pipeline_mode = #tpu.pipeline_mode<synchronous>, transform_indices = @transform_2, window_bounds = array<i64: 1, 128>}, {transform_indices = @transform_3, window_bounds = array<i64: 208, 128>}]} {
    %c0 = arith.constant 0 : index
    %c0_0 = arith.constant 0 : index
    %0 = vector.load %arg1[%c0, %c0_0] : memref<208x32xf32, #tpu.memory_space<vmem>>, vector<208x32xf32>
    %c0_1 = arith.constant 0 : index
    %c0_2 = arith.constant 0 : index
    %1 = vector.load %arg2[%c0_1, %c0_2] : memref<32x128xf32, #tpu.memory_space<vmem>>, vector<32x128xf32>
    %cst = arith.constant dense<0.000000e+00> : vector<208x128xf32>
    %2 = tpu.matmul %0, %1, %cst {dimension_numbers = #tpu.dot_dimension_numbers<[1], [0], [0], [1], [0, 0, 1, 1], [], []>} : vector<208x32xf32>, vector<32x128xf32>, vector<208x128xf32> -> vector<208x128xf32>
    %c0_3 = arith.constant 0 : index
    %c0_4 = arith.constant 0 : index
    %3 = vector.load %arg3[%c0_3, %c0_4] : memref<1x128xf32, #tpu.memory_space<vmem>>, vector<1x128xf32>
    %4 = vector.broadcast %3 : vector<1x128xf32> to vector<208x128xf32>
    %5 = arith.addf %2, %4 : vector<208x128xf32>
    %6 = math.sin %5 : vector<208x128xf32>
    %c0_5 = arith.constant 0 : index
    %c0_6 = arith.constant 0 : index
    %7 = vector.load %arg4[%c0_5, %c0_6] : memref<208x128xf32, #tpu.memory_space<vmem>>, vector<208x128xf32>
    tpu.vector_store %arg4[%c0_5, %c0_6], %6 {strides = array<i32>} : memref<208x128xf32, #tpu.memory_space<vmem>>, vector<208x128xf32>,
    return
  }
  func.func @transform_0(%arg0: i32) -> (i32, i32) {
    %c0_i32 = arith.constant 0 : i32
    %c0_i32_0 = arith.constant 0 : i32
    return %arg0, %c0_i32 : i32, i32
  }
  func.func @transform_1(%arg0: i32) -> (i32, i32) {
    %c0_i32 = arith.constant 0 : i32
    %c0_i32_0 = arith.constant 0 : i32
    %c0_i32_1 = arith.constant 0 : i32
    return %c0_i32, %c0_i32_0 : i32, i32
  }
  func.func @transform_2(%arg0: i32) -> (i32, i32) {
    %c0_i32 = arith.constant 0 : i32
    %c0_i32_0 = arith.constant 0 : i32
    %c0_i32_1 = arith.constant 0 : i32
    return %c0_i32, %c0_i32_0 : i32, i32
  }
  func.func @transform_3(%arg0: i32) -> (i32, i32) {
    %c0_i32 = arith.constant 0 : i32
    %c0_i32_0 = arith.constant 0 : i32
    return %arg0, %c0_i32 : i32, i32
  }
}

</mosaic_0001>

<llo_original>
// kernel: tpu_custom_call.1
$region0: #{tpu_custom_call.1}
  #allocation0 [shape = 'u32[]', space=smem, size = 0x4, offset = 0x4, fixed_abs, tag = 'smem constant byte address 0x4 - core index']
  #allocation1 [shape = 'u32[144,128]{1,0:T(1,128)}', space=vmem, size = 0x12000, scoped, tag = 'internal scratch']
  %s0 = inlined_call_operand.vmem [shape: f32[203,32], index: 0, kind: input, shape index: {}]
  %s1 = inlined_call_operand.vmem [shape: f32[32,128], index: 1, kind: input, shape index: {}]
  %s2 = inlined_call_operand.vmem [shape: f32[1,128], index: 2, kind: input, shape index: {}]
  %s3 = inlined_call_operand.hbm [shape: f32[203,128], index: 3, kind: output, shape index: {}]
  %s4 = sld [smem:[#allocation0]]
  $region22: #{tpu_custom_call.1} parent=0
    _
  %s6 = ssub.s32 1, %s4
  %s7 = scalar_select 0, %s6, %s4
  $region1: #{tpu_custom_call.1} parent=0
    #allocation2 [shape = 'u8[106496]{0}', space=vmem, size = 0x1a000, scoped, tag = 'output window, operand 0, single buffered']
    #allocation3 [shape = 's32[1]{0}', space=sflag, size = 0x4, scoped, tag = 'scoped memory for tpu_custom_call.1']
    %8 = vsyncpa [#allocation3], 0
    // Predicated region
    $region2: #{tpu_custom_call.1} parent=1 // pred_check
      _
    $region3: #{tpu_custom_call.1} parent=1 // pred_check_branch
      %10 = sbr.rel (0) target = $region5
    $region4: #{tpu_custom_call.1} parent=1 // pred_region
      _
    $region5: #{tpu_custom_call.1} parent=1 // pred_fallthru
      _
    // Predicated region
    $region6: #{tpu_custom_call.1} parent=1 // pred_check
      _
    $region7: #{tpu_custom_call.1} parent=1 // pred_check_branch
      %12 = sbr.rel (0) target = $region9
    $region8: #{tpu_custom_call.1} parent=1 // pred_region
      _
    $region9: #{tpu_custom_call.1} parent=1 // pred_fallthru
      _
    // Predicated region
    $region10: #{tpu_custom_call.1} parent=1 // pred_check
      _
    $region11: #{tpu_custom_call.1} parent=1 // pred_check_branch
      %14 = sbr.rel (0) target = $region13
    $region12: #{tpu_custom_call.1} parent=1 // pred_region
      _
    $region13: #{tpu_custom_call.1} parent=1 // pred_fallthru
      _
    %v15 = vld [vmem:[%s0] sm:$0xff]
    %v16 = vld [vmem:[%s0 + $0x8] sm:$0xff]
    %v17 = vld [vmem:[%s0 + $0x10] sm:$0xff]
    %v18 = vld [vmem:[%s0 + $0x18] sm:$0xff]
    %v19 = vld [vmem:[%s0 + $0x20] sm:$0xff]
    %v20 = vld [vmem:[%s0 + $0x28] sm:$0xff]
    %v21 = vld [vmem:[%s0 + $0x30] sm:$0xff]
    %v22 = vld [vmem:[%s0 + $0x38] sm:$0xff]
    %v23 = vld [vmem:[%s0 + $0x40] sm:$0xff]
    %v24 = vld [vmem:[%s0 + $0x48] sm:$0xff]
    %v25 = vld [vmem:[%s0 + $0x50] sm:$0xff]
    %v26 = vld [vmem:[%s0 + $0x58] sm:$0xff]
    %v27 = vld [vmem:[%s0 + $0x60] sm:$0xff]
    %v28 = vld [vmem:[%s0 + $0x68] sm:$0xff]
    %v29 = vld [vmem:[%s0 + $0x70] sm:$0xff]
    %v30 = vld [vmem:[%s0 + $0x78] sm:$0xff]
    %v31 = vld [vmem:[%s0 + $0x80] sm:$0xff]
    %v32 = vld [vmem:[%s0 + $0x88] sm:$0xff]
    %v33 = vld [vmem:[%s0 + $0x90] sm:$0xff]
    %v34 = vld [vmem:[%s0 + $0x98] sm:$0xff]
    %v35 = vld [vmem:[%s0 + $0xa0] sm:$0xff]
    %v36 = vld [vmem:[%s0 + $0xa8] sm:$0xff]
    %v37 = vld [vmem:[%s0 + $0xb0] sm:$0xff]
    %v38 = vld [vmem:[%s0 + $0xb8] sm:$0xff]
    %v39 = vld [vmem:[%s0 + $0xc0] sm:$0xff]
    %v40 = vld [vmem:[%s0 + $0xc8] sm:$0xff]
    %v41 = vld [vmem:[%s1] sm:$0xff]
    %v42 = vld [vmem:[%s1 + $0x8] sm:$0xff]
    %v43 = vld [vmem:[%s1 + $0x10] sm:$0xff]
    %v44 = vld [vmem:[%s1 + $0x18] sm:$0xff]
    %v45 = vld [vmem:[%s2] sm:$0x1]
    %v47 = vlaneseq
    %v48 = vshrl.u32 %v47, 7
    %v49 = vsub.s32 0, %v48
    %v50 = vrot.slane %v45, %v49
    %vm52 = vcmask 261120
    %v54 = vsel %vm52, %v15, 0
    %v57 = vsel %vm52, %v16, 0
    %v60 = vsel %vm52, %v17, 0
    %v63 = vsel %vm52, %v18, 0
    %v66 = vsel %vm52, %v19, 0
    %v69 = vsel %vm52, %v20, 0
    %v72 = vsel %vm52, %v21, 0
    %v75 = vsel %vm52, %v22, 0
    %v78 = vsel %vm52, %v23, 0
    %v81 = vsel %vm52, %v24, 0
    %v84 = vsel %vm52, %v25, 0
    %v87 = vsel %vm52, %v26, 0
    %v90 = vsel %vm52, %v27, 0
    %v93 = vsel %vm52, %v28, 0
    %v96 = vsel %vm52, %v29, 0
    %v99 = vsel %vm52, %v30, 0
    %v102 = vsel %vm52, %v31, 0
    %v105 = vsel %vm52, %v32, 0
    %v108 = vsel %vm52, %v33, 0
    %v111 = vsel %vm52, %v34, 0
    %v114 = vsel %vm52, %v35, 0
    %v117 = vsel %vm52, %v36, 0
    %v120 = vsel %vm52, %v37, 0
    %v123 = vsel %vm52, %v38, 0
    %v126 = vsel %vm52, %v39, 0
    %v129 = vsel %vm52, %v40, 0
    %131 = vmatprep.subr.mxu0 0.0
    %132 = vmatpush1.msra.mxu0 0.0
    %133 = vmatprep.subr.mxu0 0.0
    %134 = vmatpush1.msra.mxu0 0.0
    %135 = vmatprep.subr.mxu0 0.0
    %136 = vmatpush1.msra.mxu0 0.0
    %137 = vmatprep.subr.mxu0 0.0
    %138 = vmatpush1.msra.mxu0 0.0
    %139 = vmatprep.subr.mxu0 0.0
    %140 = vmatpush1.msra.mxu0 0.0
    %141 = vmatprep.subr.mxu0 0.0
    %142 = vmatpush1.msra.mxu0 0.0
    %143 = vmatprep.subr.mxu0 0.0
    %144 = vmatpush1.msra.mxu0 0.0
    %145 = vmatprep.subr.mxu0 0.0
    %146 = vmatpush1.msra.mxu0 0.0
    %147 = vmatprep.subr.mxu0 0.0
    %148 = vmatpush1.msra.mxu0 0.0
    %149 = vmatprep.subr.mxu0 0.0
    %150 = vmatpush1.msra.mxu0 0.0
    %151 = vmatprep.subr.mxu0 0.0
    %152 = vmatpush1.msra.mxu0 0.0
    %153 = vmatprep.subr.mxu0 0.0
    %154 = vmatpush1.msra.mxu0 0.0
    %155 = vmatprep.subr.mxu0 0.0
    %156 = vmatpush1.msra.mxu0 %v44
    %157 = vmatprep.subr.mxu0 0.0
    %158 = vmatpush1.msra.mxu0 %v43
    %159 = vmatprep.subr.mxu0 0.0
    %160 = vmatpush1.msra.mxu0 %v42
    %161 = vmatprep.subr.mxu0 0.0
    %162 = vmatpush1.msra.mxu0 %v41
    %163 = vmatprep.subr.mxu0 0.0
    %164 = vmatpush2.msra.mxu0 0.0
    %165 = vmatprep.subr.mxu0 0.0
    %166 = vmatpush2.msra.mxu0 0.0
    %167 = vmatprep.subr.mxu0 0.0
    %168 = vmatpush2.msra.mxu0 0.0
    %169 = vmatprep.subr.mxu0 0.0
    %170 = vmatpush2.msra.mxu0 0.0
    %171 = vmatprep.subr.mxu0 0.0
    %172 = vmatpush2.msra.mxu0 0.0
    %173 = vmatprep.subr.mxu0 0.0
    %174 = vmatpush2.msra.mxu0 0.0
    %175 = vmatprep.subr.mxu0 0.0
    %176 = vmatpush2.msra.mxu0 0.0
    %177 = vmatprep.subr.mxu0 0.0
    %178 = vmatpush2.msra.mxu0 0.0
    %179 = vmatprep.subr.mxu0 0.0
    %180 = vmatpush2.msra.mxu0 0.0
    %181 = vmatprep.subr.mxu0 0.0
    %182 = vmatpush2.msra.mxu0 0.0
    %183 = vmatprep.subr.mxu0 0.0
    %184 = vmatpush2.msra.mxu0 0.0
    %185 = vmatprep.subr.mxu0 0.0
    %186 = vmatpush2.msra.mxu0 0.0
    %187 = vmatprep.subr.mxu0 0.0
    %188 = vmatpush2.msra.mxu0 0.0
    %189 = vmatprep.subr.mxu0 0.0
    %190 = vmatpush2.msra.mxu0 0.0
    %191 = vmatprep.subr.mxu0 0.0
    %192 = vmatpush2.msra.mxu0 0.0
    %193 = vmatprep.subr.mxu0 0.0
    %194 = vmatpush2.msra.mxu0 0.0
    %195 = vmatprep.mubr.f32.mxu0 0.0
    %196 = vmatmul.mubr.f32.gmra.mxu0 %v54
    %v197 = vpop.f32.mrf.mxu0
    %v198 = vadd.f32 %v50, %v197
    %v199 = vpop.f32.mrf.mxu0
    %200 = vmatprep.mubr.f32.mxu0 0.0
    %201 = vmatmul.mubr.f32.gmra.mxu0 %v57
    %v202 = vpop.f32.mrf.mxu0
    %v203 = vadd.f32 %v50, %v202
    %v204 = vpop.f32.mrf.mxu0
    %205 = vmatprep.mubr.f32.mxu0 0.0
    %206 = vmatmul.mubr.f32.gmra.mxu0 %v60
    %v207 = vpop.f32.mrf.mxu0
    %v208 = vadd.f32 %v50, %v207
    %v209 = vpop.f32.mrf.mxu0
    %210 = vmatprep.mubr.f32.mxu0 0.0
    %211 = vmatmul.mubr.f32.gmra.mxu0 %v63
    %v212 = vpop.f32.mrf.mxu0
    %v213 = vadd.f32 %v50, %v212
    %v214 = vpop.f32.mrf.mxu0
    %215 = vmatprep.mubr.f32.mxu0 0.0
    %216 = vmatmul.mubr.f32.gmra.mxu0 %v66
    %v217 = vpop.f32.mrf.mxu0
    %v218 = vadd.f32 %v50, %v217
    %v219 = vpop.f32.mrf.mxu0
    %220 = vmatprep.mubr.f32.mxu0 0.0
    %221 = vmatmul.mubr.f32.gmra.mxu0 %v69
    %v222 = vpop.f32.mrf.mxu0
    %v223 = vadd.f32 %v50, %v222
    %v224 = vpop.f32.mrf.mxu0
    %225 = vmatprep.mubr.f32.mxu0 0.0
    %226 = vmatmul.mubr.f32.gmra.mxu0 %v72
    %v227 = vpop.f32.mrf.mxu0
    %v228 = vadd.f32 %v50, %v227
    %v229 = vpop.f32.mrf.mxu0
    %230 = vmatprep.mubr.f32.mxu0 0.0
    %231 = vmatmul.mubr.f32.gmra.mxu0 %v75
    %v232 = vpop.f32.mrf.mxu0
    %v233 = vadd.f32 %v50, %v232
    %v234 = vpop.f32.mrf.mxu0
    %235 = vmatprep.mubr.f32.mxu0 0.0
    %236 = vmatmul.mubr.f32.gmra.mxu0 %v78
    %v237 = vpop.f32.mrf.mxu0
    %v238 = vadd.f32 %v50, %v237
    %v239 = vpop.f32.mrf.mxu0
    %240 = vmatprep.mubr.f32.mxu0 0.0
    %241 = vmatmul.mubr.f32.gmra.mxu0 %v81
    %v242 = vpop.f32.mrf.mxu0
    %v243 = vadd.f32 %v50, %v242
    %v244 = vpop.f32.mrf.mxu0
    %245 = vmatprep.mubr.f32.mxu0 0.0
    %246 = vmatmul.mubr.f32.gmra.mxu0 %v84
    %v247 = vpop.f32.mrf.mxu0
    %v248 = vadd.f32 %v50, %v247
    %v249 = vpop.f32.mrf.mxu0
    %250 = vmatprep.mubr.f32.mxu0 0.0
    %251 = vmatmul.mubr.f32.gmra.mxu0 %v87
    %v252 = vpop.f32.mrf.mxu0
    %v253 = vadd.f32 %v50, %v252
    %v254 = vpop.f32.mrf.mxu0
    %255 = vmatprep.mubr.f32.mxu0 0.0
    %256 = vmatmul.mubr.f32.gmra.mxu0 %v90
    %v257 = vpop.f32.mrf.mxu0
    %v258 = vadd.f32 %v50, %v257
    %v259 = vpop.f32.mrf.mxu0
    %260 = vmatprep.mubr.f32.mxu0 0.0
    %261 = vmatmul.mubr.f32.gmra.mxu0 %v93
    %v262 = vpop.f32.mrf.mxu0
    %v263 = vadd.f32 %v50, %v262
    %v264 = vpop.f32.mrf.mxu0
    %265 = vmatprep.mubr.f32.mxu0 0.0
    %266 = vmatmul.mubr.f32.gmra.mxu0 %v96
    %v267 = vpop.f32.mrf.mxu0
    %v268 = vadd.f32 %v50, %v267
    %v269 = vpop.f32.mrf.mxu0
    %270 = vmatprep.mubr.f32.mxu0 0.0
    %271 = vmatmul.mubr.f32.gmra.mxu0 %v99
    %v272 = vpop.f32.mrf.mxu0
    %v273 = vadd.f32 %v50, %v272
    %v274 = vpop.f32.mrf.mxu0
    %275 = vmatprep.mubr.f32.mxu0 0.0
    %276 = vmatmul.mubr.f32.gmra.mxu0 %v102
    %v277 = vpop.f32.mrf.mxu0
    %v278 = vadd.f32 %v50, %v277
    %v279 = vpop.f32.mrf.mxu0
    %280 = vmatprep.mubr.f32.mxu0 0.0
    %281 = vmatmul.mubr.f32.gmra.mxu0 %v105
    %v282 = vpop.f32.mrf.mxu0
    %v283 = vadd.f32 %v50, %v282
    %v284 = vpop.f32.mrf.mxu0
    %285 = vmatprep.mubr.f32.mxu0 0.0
    %286 = vmatmul.mubr.f32.gmra.mxu0 %v108
    %v287 = vpop.f32.mrf.mxu0
    %v288 = vadd.f32 %v50, %v287
    %v289 = vpop.f32.mrf.mxu0
    %290 = vmatprep.mubr.f32.mxu0 0.0
    %291 = vmatmul.mubr.f32.gmra.mxu0 %v111
    %v292 = vpop.f32.mrf.mxu0
    %v293 = vadd.f32 %v50, %v292
    %v294 = vpop.f32.mrf.mxu0
    %295 = vmatprep.mubr.f32.mxu0 0.0
    %296 = vmatmul.mubr.f32.gmra.mxu0 %v114
    %v297 = vpop.f32.mrf.mxu0
    %v298 = vadd.f32 %v50, %v297
    %v299 = vpop.f32.mrf.mxu0
    %300 = vmatprep.mubr.f32.mxu0 0.0
    %301 = vmatmul.mubr.f32.gmra.mxu0 %v117
    %v302 = vpop.f32.mrf.mxu0
    %v303 = vadd.f32 %v50, %v302
    %v304 = vpop.f32.mrf.mxu0
    %305 = vmatprep.mubr.f32.mxu0 0.0
    %306 = vmatmul.mubr.f32.gmra.mxu0 %v120
    %v307 = vpop.f32.mrf.mxu0
    %v308 = vadd.f32 %v50, %v307
    %v309 = vpop.f32.mrf.mxu0
    %310 = vmatprep.mubr.f32.mxu0 0.0
    %311 = vmatmul.mubr.f32.gmra.mxu0 %v123
    %v312 = vpop.f32.mrf.mxu0
    %v313 = vadd.f32 %v50, %v312
    %v314 = vpop.f32.mrf.mxu0
    %315 = vmatprep.mubr.f32.mxu0 0.0
    %316 = vmatmul.mubr.f32.gmra.mxu0 %v126
    %v317 = vpop.f32.mrf.mxu0
    %v318 = vadd.f32 %v50, %v317
    %v319 = vpop.f32.mrf.mxu0
    %320 = vmatprep.mubr.f32.mxu0 0.0
    %321 = vmatmul.mubr.f32.gmra.mxu0 %v129
    %v322 = vpop.f32.mrf.mxu0
    %v323 = vadd.f32 %v50, %v322
    %v324 = vpop.f32.mrf.mxu0
    %325 = vdwg.mxu0
    %v326 = vand.u32 2147483647, %v198
    %vm327 = vcmp.le.f32.partialorder %v326, 0.7853982
    %vm328 = vcmp.lt.s32.totalorder %v198, 0
    %v329 = vand.u32 %v198, 2139095040
    %v330 = vshrl.u32 %v329, 23
    %v331 = vsub.s32 %v330, 127
    %v332 = vand.u32 2147483647, %v198
    %v333 = vand.u32 %v332, 8388607
    %v334 = vor.u32 %v333, 8388608
    %v335 = vsub.s32 0, %v334
    %v336 = vadd.s32 %v331, 1
    %vm337 = vcmp.gt.s32.totalorder %v336, 0
    %v338 = vsel %vm337, %v336, 0
    %v339 = vshrl.u32 %v338, 5
    %v340 = vand.u32 %v338, 31
    %v341 = vsub.s32 32, %v340
    %v342 = vshrl.u32 683565275, %v341
    %v343 = vshll.u32 683565275, %v340
    %v344 = vshrl.u32 2475754826, %v341
    %v345 = vor.u32 %v343, %v344
    %v346 = vshll.u32 2475754826, %v340
    %v347 = vshrl.u32 2131351028, %v341
    %v348 = vor.u32 %v346, %v347
    %v349 = vshll.u32 2131351028, %v340
    %v350 = vshrl.u32 2102212464, %v341
    %v351 = vor.u32 %v349, %v350
    %v352 = vshll.u32 2102212464, %v340
    %v353 = vshrl.u32 920167782, %v341
    %v354 = vor.u32 %v352, %v353
    %v355 = vshll.u32 920167782, %v340
    %v356 = vshrl.u32 1326507024, %v341
    %v357 = vor.u32 %v355, %v356
    %vm358 = vcmp.lt.s32.totalorder %v339, 1
    %vm359 = vcmp.lt.s32.totalorder %v339, 2
    %vm360 = vcmp.lt.s32.totalorder %v339, 3
    %vm361 = vcmp.lt.s32.totalorder %v339, 4
    %v362 = vsel %vm358, %v342, %v345
    %v363 = vsel %vm361, %v351, 2102212464
    %v364 = vsel %vm360, %v348, %v363
    %v365 = vsel %vm359, %v362, %v364
    %v366 = vsel %vm358, %v345, %v348
    %v367 = vsel %vm361, %v354, 920167782
    %v368 = vsel %vm360, %v351, %v367
    %v369 = vsel %vm359, %v366, %v368
    %v370 = vsel %vm358, %v348, %v351
    %v371 = vsel %vm361, %v357, 1326507024
    %v372 = vsel %vm360, %v354, %v371
    %v373 = vsel %vm359, %v370, %v372
    %v374 = vshll.u32 %v334, 8
    %v375 = vmul.u32.u64.compose %v374, %v373
    %v376 = vextract.low.u32 %v375
    %v377 = vextract.high.u32 %v375
    %v378 = vmul.u32.u64.compose %v374, %v369
    %v379 = vextract.low.u32 %v378
    %v380 = vextract.high.u32 %v378
    %v381 = vmul.u32 %v374, %v365
    %v382 = vadd.s32 %v377, %v379
    %vm383 = vc.u32 %v377, %v379
    %v384 = vadd.s32 %v380, 1
    %v385 = vsel %vm383, %v384, %v380
    %v386 = vadd.s32 %v381, %v385
    %v387 = vadd.s32 %v386, 536870912
    %v388 = vshrl.u32 %v387, 30
    %v389 = vshll.u32 %v388, 30
    %v390 = vsub.s32 %v386, %v389
    %vm391 = vcmp.lt.s32.totalorder %v390, 0
    %v392 = vsub.s32 0, %v390
    %v393 = vsel %vm391, %v392, %v390
    %v394 = vclz %v393
    %v395 = vsub.s32 %v394, 2
    %vm396 = vcmp.gt.s32.totalorder 0, %v395
    %v397 = vsel %vm396, 0, %v395
    %v398 = vsub.s32 32, %v397
    %v399 = vshll.u32 %v390, %v397
    %v400 = vshrl.u32 %v382, %v398
    %v401 = vor.u32 %v399, %v400
    %v402 = vsub.s32 4294967266, %v397
    %v403 = vadd.s32 %v402, 127
    %v404 = vshll.u32 %v403, 23
    %v405 = vor.u32 4788187, %v404
    %v406 = vand.u32 2147483647, %v405
    %v408 = vcvt.s32.f32 %v401
    %v409 = vmul.f32 %v408, %v406
    %v410 = vxor.u32 %v409, 2147483648
    %v411 = vsel %vm328, %v410, %v409
    %v412 = vsub.s32 4, %v388
    %v413 = vsel %vm328, %v412, %v388
    %v414 = vsel %vm327, %v198, %v411
    %v415 = vsel %vm327, 0, %v413
    %v416 = vcosq.f32.pop %v414
    %v417 = vsinq.f32.pop %v414
    %vm418 = vweird.f32 %v198
    %v419 = vadd.s32 %v415, 3
    %v420 = vand.u32 %v419, 3
    %vm421 = vcmp.lt.s32.totalorder %v420, 2
    %vm422 = vcmp.eq.s32.totalorder %v420, 0
    %v423 = vxor.u32 %v417, 2147483648
    %v424 = vsel %vm422, %v416, %v423
    %vm425 = vcmp.eq.s32.totalorder %v420, 2
    %v426 = vxor.u32 %v416, 2147483648
    %v427 = vsel %vm425, %v426, %v417
    %v428 = vsel %vm421, %v424, %v427
    %v429 = vsel %vm418, nan, %v428
    %v430 = vand.u32 2147483647, %v203
    %vm431 = vcmp.le.f32.partialorder %v430, 0.7853982
    %vm432 = vcmp.lt.s32.totalorder %v203, 0
    %v433 = vand.u32 %v203, 2139095040
    %v434 = vshrl.u32 %v433, 23
    %v435 = vsub.s32 %v434, 127
    %v436 = vand.u32 2147483647, %v203
    %v437 = vand.u32 %v436, 8388607
    %v438 = vor.u32 %v437, 8388608
    %v439 = vsub.s32 0, %v438
    %v440 = vadd.s32 %v435, 1
    %vm441 = vcmp.gt.s32.totalorder %v440, 0
    %v442 = vsel %vm441, %v440, 0
    %v443 = vshrl.u32 %v442, 5
    %v444 = vand.u32 %v442, 31
    %v445 = vsub.s32 32, %v444
    %v446 = vshrl.u32 683565275, %v445
    %v447 = vshll.u32 683565275, %v444
    %v448 = vshrl.u32 2475754826, %v445
    %v449 = vor.u32 %v447, %v448
    %v450 = vshll.u32 2475754826, %v444
    %v451 = vshrl.u32 2131351028, %v445
    %v452 = vor.u32 %v450, %v451
    %v453 = vshll.u32 2131351028, %v444
    %v454 = vshrl.u32 2102212464, %v445
    %v455 = vor.u32 %v453, %v454
    %v456 = vshll.u32 2102212464, %v444
    %v457 = vshrl.u32 920167782, %v445
    %v458 = vor.u32 %v456, %v457
    %v459 = vshll.u32 920167782, %v444
    %v460 = vshrl.u32 1326507024, %v445
    %v461 = vor.u32 %v459, %v460
    %vm462 = vcmp.lt.s32.totalorder %v443, 1
    %vm463 = vcmp.lt.s32.totalorder %v443, 2
    %vm464 = vcmp.lt.s32.totalorder %v443, 3
    %vm465 = vcmp.lt.s32.totalorder %v443, 4
    %v466 = vsel %vm462, %v446, %v449
    %v467 = vsel %vm465, %v455, 2102212464
    %v468 = vsel %vm464, %v452, %v467
    %v469 = vsel %vm463, %v466, %v468
    %v470 = vsel %vm462, %v449, %v452
    %v471 = vsel %vm465, %v458, 920167782
    %v472 = vsel %vm464, %v455, %v471
    %v473 = vsel %vm463, %v470, %v472
    %v474 = vsel %vm462, %v452, %v455
    %v475 = vsel %vm465, %v461, 1326507024
    %v476 = vsel %vm464, %v458, %v475
    %v477 = vsel %vm463, %v474, %v476
    %v478 = vshll.u32 %v438, 8
    %v479 = vmul.u32.u64.compose %v478, %v477
    %v480 = vextract.low.u32 %v479
    %v481 = vextract.high.u32 %v479
    %v482 = vmul.u32.u64.compose %v478, %v473
    %v483 = vextract.low.u32 %v482
    %v484 = vextract.high.u32 %v482
    %v485 = vmul.u32 %v478, %v469
    %v486 = vadd.s32 %v481, %v483
    %vm487 = vc.u32 %v481, %v483
    %v488 = vadd.s32 %v484, 1
    %v489 = vsel %vm487, %v488, %v484
    %v490 = vadd.s32 %v485, %v489
    %v491 = vadd.s32 %v490, 536870912
    %v492 = vshrl.u32 %v491, 30
    %v493 = vshll.u32 %v492, 30
    %v494 = vsub.s32 %v490, %v493
    %vm495 = vcmp.lt.s32.totalorder %v494, 0
    %v496 = vsub.s32 0, %v494
    %v497 = vsel %vm495, %v496, %v494
    %v498 = vclz %v497
    %v499 = vsub.s32 %v498, 2
    %vm500 = vcmp.gt.s32.totalorder 0, %v499
    %v501 = vsel %vm500, 0, %v499
    %v502 = vsub.s32 32, %v501
    %v503 = vshll.u32 %v494, %v501
    %v504 = vshrl.u32 %v486, %v502
    %v505 = vor.u32 %v503, %v504
    %v506 = vsub.s32 4294967266, %v501
    %v507 = vadd.s32 %v506, 127
    %v508 = vshll.u32 %v507, 23
    %v509 = vor.u32 4788187, %v508
    %v510 = vand.u32 2147483647, %v509
    %v512 = vcvt.s32.f32 %v505
    %v513 = vmul.f32 %v512, %v510
    %v514 = vxor.u32 %v513, 2147483648
    %v515 = vsel %vm432, %v514, %v513
    %v516 = vsub.s32 4, %v492
    %v517 = vsel %vm432, %v516, %v492
    %v518 = vsel %vm431, %v203, %v515
    %v519 = vsel %vm431, 0, %v517
    %v520 = vcosq.f32.pop %v518
    %v521 = vsinq.f32.pop %v518
    %vm522 = vweird.f32 %v203
    %v523 = vadd.s32 %v519, 3
    %v524 = vand.u32 %v523, 3
    %vm525 = vcmp.lt.s32.totalorder %v524, 2
    %vm526 = vcmp.eq.s32.totalorder %v524, 0
    %v527 = vxor.u32 %v521, 2147483648
    %v528 = vsel %vm526, %v520, %v527
    %vm529 = vcmp.eq.s32.totalorder %v524, 2
    %v530 = vxor.u32 %v520, 2147483648
    %v531 = vsel %vm529, %v530, %v521
    %v532 = vsel %vm525, %v528, %v531
    %v533 = vsel %vm522, nan, %v532
    %v534 = vand.u32 2147483647, %v208
    %vm535 = vcmp.le.f32.partialorder %v534, 0.7853982
    %vm536 = vcmp.lt.s32.totalorder %v208, 0
    %v537 = vand.u32 %v208, 2139095040
    %v538 = vshrl.u32 %v537, 23
    %v539 = vsub.s32 %v538, 127
    %v540 = vand.u32 2147483647, %v208
    %v541 = vand.u32 %v540, 8388607
    %v542 = vor.u32 %v541, 8388608
    %v543 = vsub.s32 0, %v542
    %v544 = vadd.s32 %v539, 1
    %vm545 = vcmp.gt.s32.totalorder %v544, 0
    %v546 = vsel %vm545, %v544, 0
    %v547 = vshrl.u32 %v546, 5
    %v548 = vand.u32 %v546, 31
    %v549 = vsub.s32 32, %v548
    %v550 = vshrl.u32 683565275, %v549
    %v551 = vshll.u32 683565275, %v548
    %v552 = vshrl.u32 2475754826, %v549
    %v553 = vor.u32 %v551, %v552
    %v554 = vshll.u32 2475754826, %v548
    %v555 = vshrl.u32 2131351028, %v549
    %v556 = vor.u32 %v554, %v555
    %v557 = vshll.u32 2131351028, %v548
    %v558 = vshrl.u32 2102212464, %v549
    %v559 = vor.u32 %v557, %v558
    %v560 = vshll.u32 2102212464, %v548
    %v561 = vshrl.u32 920167782, %v549
    %v562 = vor.u32 %v560, %v561
    %v563 = vshll.u32 920167782, %v548
    %v564 = vshrl.u32 1326507024, %v549
    %v565 = vor.u32 %v563, %v564
    %vm566 = vcmp.lt.s32.totalorder %v547, 1
    %vm567 = vcmp.lt.s32.totalorder %v547, 2
    %vm568 = vcmp.lt.s32.totalorder %v547, 3
    %vm569 = vcmp.lt.s32.totalorder %v547, 4
    %v570 = vsel %vm566, %v550, %v553
    %v571 = vsel %vm569, %v559, 2102212464
    %v572 = vsel %vm568, %v556, %v571
    %v573 = vsel %vm567, %v570, %v572
    %v574 = vsel %vm566, %v553, %v556
    %v575 = vsel %vm569, %v562, 920167782
    %v576 = vsel %vm568, %v559, %v575
    %v577 = vsel %vm567, %v574, %v576
    %v578 = vsel %vm566, %v556, %v559
    %v579 = vsel %vm569, %v565, 1326507024
    %v580 = vsel %vm568, %v562, %v579
    %v581 = vsel %vm567, %v578, %v580
    %v582 = vshll.u32 %v542, 8
    %v583 = vmul.u32.u64.compose %v582, %v581
    %v584 = vextract.low.u32 %v583
    %v585 = vextract.high.u32 %v583
    %v586 = vmul.u32.u64.compose %v582, %v577
    %v587 = vextract.low.u32 %v586
    %v588 = vextract.high.u32 %v586
    %v589 = vmul.u32 %v582, %v573
    %v590 = vadd.s32 %v585, %v587
    %vm591 = vc.u32 %v585, %v587
    %v592 = vadd.s32 %v588, 1
    %v593 = vsel %vm591, %v592, %v588
    %v594 = vadd.s32 %v589, %v593
    %v595 = vadd.s32 %v594, 536870912
    %v596 = vshrl.u32 %v595, 30
    %v597 = vshll.u32 %v596, 30
    %v598 = vsub.s32 %v594, %v597
    %vm599 = vcmp.lt.s32.totalorder %v598, 0
    %v600 = vsub.s32 0, %v598
    %v601 = vsel %vm599, %v600, %v598
    %v602 = vclz %v601
    %v603 = vsub.s32 %v602, 2
    %vm604 = vcmp.gt.s32.totalorder 0, %v603
    %v605 = vsel %vm604, 0, %v603
    %v606 = vsub.s32 32, %v605
    %v607 = vshll.u32 %v598, %v605
    %v608 = vshrl.u32 %v590, %v606
    %v609 = vor.u32 %v607, %v608
    %v610 = vsub.s32 4294967266, %v605
    %v611 = vadd.s32 %v610, 127
    %v612 = vshll.u32 %v611, 23
    %v613 = vor.u32 4788187, %v612
    %v614 = vand.u32 2147483647, %v613
    %v616 = vcvt.s32.f32 %v609
    %v617 = vmul.f32 %v616, %v614
    %v618 = vxor.u32 %v617, 2147483648
    %v619 = vsel %vm536, %v618, %v617
    %v620 = vsub.s32 4, %v596
    %v621 = vsel %vm536, %v620, %v596
    %v622 = vsel %vm535, %v208, %v619
    %v623 = vsel %vm535, 0, %v621
    %v624 = vcosq.f32.pop %v622
    %v625 = vsinq.f32.pop %v622
    %vm626 = vweird.f32 %v208
    %v627 = vadd.s32 %v623, 3
    %v628 = vand.u32 %v627, 3
    %vm629 = vcmp.lt.s32.totalorder %v628, 2
    %vm630 = vcmp.eq.s32.totalorder %v628, 0
    %v631 = vxor.u32 %v625, 2147483648
    %v632 = vsel %vm630, %v624, %v631
    %vm633 = vcmp.eq.s32.totalorder %v628, 2
    %v634 = vxor.u32 %v624, 2147483648
    %v635 = vsel %vm633, %v634, %v625
    %v636 = vsel %vm629, %v632, %v635
    %v637 = vsel %vm626, nan, %v636
    %v638 = vand.u32 2147483647, %v213
    %vm639 = vcmp.le.f32.partialorder %v638, 0.7853982
    %vm640 = vcmp.lt.s32.totalorder %v213, 0
    %v641 = vand.u32 %v213, 2139095040
    %v642 = vshrl.u32 %v641, 23
    %v643 = vsub.s32 %v642, 127
    %v644 = vand.u32 2147483647, %v213
    %v645 = vand.u32 %v644, 8388607
    %v646 = vor.u32 %v645, 8388608
    %v647 = vsub.s32 0, %v646
    %v648 = vadd.s32 %v643, 1
    %vm649 = vcmp.gt.s32.totalorder %v648, 0
    %v650 = vsel %vm649, %v648, 0
    %v651 = vshrl.u32 %v650, 5
    %v652 = vand.u32 %v650, 31
    %v653 = vsub.s32 32, %v652
    %v654 = vshrl.u32 683565275, %v653
    %v655 = vshll.u32 683565275, %v652
    %v656 = vshrl.u32 2475754826, %v653
    %v657 = vor.u32 %v655, %v656
    %v658 = vshll.u32 2475754826, %v652
    %v659 = vshrl.u32 2131351028, %v653
    %v660 = vor.u32 %v658, %v659
    %v661 = vshll.u32 2131351028, %v652
    %v662 = vshrl.u32 2102212464, %v653
    %v663 = vor.u32 %v661, %v662
    %v664 = vshll.u32 2102212464, %v652
    %v665 = vshrl.u32 920167782, %v653
    %v666 = vor.u32 %v664, %v665
    %v667 = vshll.u32 920167782, %v652
    %v668 = vshrl.u32 1326507024, %v653
    %v669 = vor.u32 %v667, %v668
    %vm670 = vcmp.lt.s32.totalorder %v651, 1
    %vm671 = vcmp.lt.s32.totalorder %v651, 2
    %vm672 = vcmp.lt.s32.totalorder %v651, 3
    %vm673 = vcmp.lt.s32.totalorder %v651, 4
    %v674 = vsel %vm670, %v654, %v657
    %v675 = vsel %vm673, %v663, 2102212464
    %v676 = vsel %vm672, %v660, %v675
    %v677 = vsel %vm671, %v674, %v676
    %v678 = vsel %vm670, %v657, %v660
    %v679 = vsel %vm673, %v666, 920167782
    %v680 = vsel %vm672, %v663, %v679
    %v681 = vsel %vm671, %v678, %v680
    %v682 = vsel %vm670, %v660, %v663
    %v683 = vsel %vm673, %v669, 1326507024
    %v684 = vsel %vm672, %v666, %v683
    %v685 = vsel %vm671, %v682, %v684
    %v686 = vshll.u32 %v646, 8
    %v687 = vmul.u32.u64.compose %v686, %v685
    %v688 = vextract.low.u32 %v687
    %v689 = vextract.high.u32 %v687
    %v690 = vmul.u32.u64.compose %v686, %v681
    %v691 = vextract.low.u32 %v690
    %v692 = vextract.high.u32 %v690
    %v693 = vmul.u32 %v686, %v677
    %v694 = vadd.s32 %v689, %v691
    %vm695 = vc.u32 %v689, %v691
    %v696 = vadd.s32 %v692, 1
    %v697 = vsel %vm695, %v696, %v692
    %v698 = vadd.s32 %v693, %v697
    %v699 = vadd.s32 %v698, 536870912
    %v700 = vshrl.u32 %v699, 30
    %v701 = vshll.u32 %v700, 30
    %v702 = vsub.s32 %v698, %v701
    %vm703 = vcmp.lt.s32.totalorder %v702, 0
    %v704 = vsub.s32 0, %v702
    %v705 = vsel %vm703, %v704, %v702
    %v706 = vclz %v705
    %v707 = vsub.s32 %v706, 2
    %vm708 = vcmp.gt.s32.totalorder 0, %v707
    %v709 = vsel %vm708, 0, %v707
    %v710 = vsub.s32 32, %v709
    %v711 = vshll.u32 %v702, %v709
    %v712 = vshrl.u32 %v694, %v710
    %v713 = vor.u32 %v711, %v712
    %v714 = vsub.s32 4294967266, %v709
    %v715 = vadd.s32 %v714, 127
    %v716 = vshll.u32 %v715, 23
    %v717 = vor.u32 4788187, %v716
    %v718 = vand.u32 2147483647, %v717
    %v720 = vcvt.s32.f32 %v713
    %v721 = vmul.f32 %v720, %v718
    %v722 = vxor.u32 %v721, 2147483648
    %v723 = vsel %vm640, %v722, %v721
    %v724 = vsub.s32 4, %v700
    %v725 = vsel %vm640, %v724, %v700
    %v726 = vsel %vm639, %v213, %v723
    %v727 = vsel %vm639, 0, %v725
    %v728 = vcosq.f32.pop %v726
    %v729 = vsinq.f32.pop %v726
    %vm730 = vweird.f32 %v213
    %v731 = vadd.s32 %v727, 3
    %v732 = vand.u32 %v731, 3
    %vm733 = vcmp.lt.s32.totalorder %v732, 2
    %vm734 = vcmp.eq.s32.totalorder %v732, 0
    %v735 = vxor.u32 %v729, 2147483648
    %v736 = vsel %vm734, %v728, %v735
    %vm737 = vcmp.eq.s32.totalorder %v732, 2
    %v738 = vxor.u32 %v728, 2147483648
    %v739 = vsel %vm737, %v738, %v729
    %v740 = vsel %vm733, %v736, %v739
    %v741 = vsel %vm730, nan, %v740
    %v742 = vand.u32 2147483647, %v218
    %vm743 = vcmp.le.f32.partialorder %v742, 0.7853982
    %vm744 = vcmp.lt.s32.totalorder %v218, 0
    %v745 = vand.u32 %v218, 2139095040
    %v746 = vshrl.u32 %v745, 23
    %v747 = vsub.s32 %v746, 127
    %v748 = vand.u32 2147483647, %v218
    %v749 = vand.u32 %v748, 8388607
    %v750 = vor.u32 %v749, 8388608
    %v751 = vsub.s32 0, %v750
    %v752 = vadd.s32 %v747, 1
    %vm753 = vcmp.gt.s32.totalorder %v752, 0
    %v754 = vsel %vm753, %v752, 0
    %v755 = vshrl.u32 %v754, 5
    %v756 = vand.u32 %v754, 31
    %v757 = vsub.s32 32, %v756
    %v758 = vshrl.u32 683565275, %v757
    %v759 = vshll.u32 683565275, %v756
    %v760 = vshrl.u32 2475754826, %v757
    %v761 = vor.u32 %v759, %v760
    %v762 = vshll.u32 2475754826, %v756
    %v763 = vshrl.u32 2131351028, %v757
    %v764 = vor.u32 %v762, %v763
    %v765 = vshll.u32 2131351028, %v756
    %v766 = vshrl.u32 2102212464, %v757
    %v767 = vor.u32 %v765, %v766
    %v768 = vshll.u32 2102212464, %v756
    %v769 = vshrl.u32 920167782, %v757
    %v770 = vor.u32 %v768, %v769
    %v771 = vshll.u32 920167782, %v756
    %v772 = vshrl.u32 1326507024, %v757
    %v773 = vor.u32 %v771, %v772
    %vm774 = vcmp.lt.s32.totalorder %v755, 1
    %vm775 = vcmp.lt.s32.totalorder %v755, 2
    %vm776 = vcmp.lt.s32.totalorder %v755, 3
    %vm777 = vcmp.lt.s32.totalorder %v755, 4
    %v778 = vsel %vm774, %v758, %v761
    %v779 = vsel %vm777, %v767, 2102212464
    %v780 = vsel %vm776, %v764, %v779
    %v781 = vsel %vm775, %v778, %v780
    %v782 = vsel %vm774, %v761, %v764
    %v783 = vsel %vm777, %v770, 920167782
    %v784 = vsel %vm776, %v767, %v783
    %v785 = vsel %vm775, %v782, %v784
    %v786 = vsel %vm774, %v764, %v767
    %v787 = vsel %vm777, %v773, 1326507024
    %v788 = vsel %vm776, %v770, %v787
    %v789 = vsel %vm775, %v786, %v788
    %v790 = vshll.u32 %v750, 8
    %v791 = vmul.u32.u64.compose %v790, %v789
    %v792 = vextract.low.u32 %v791
    %v793 = vextract.high.u32 %v791
    %v794 = vmul.u32.u64.compose %v790, %v785
    %v795 = vextract.low.u32 %v794
    %v796 = vextract.high.u32 %v794
    %v797 = vmul.u32 %v790, %v781
    %v798 = vadd.s32 %v793, %v795
    %vm799 = vc.u32 %v793, %v795
    %v800 = vadd.s32 %v796, 1
    %v801 = vsel %vm799, %v800, %v796
    %v802 = vadd.s32 %v797, %v801
    %v803 = vadd.s32 %v802, 536870912
    %v804 = vshrl.u32 %v803, 30
    %v805 = vshll.u32 %v804, 30
    %v806 = vsub.s32 %v802, %v805
    %vm807 = vcmp.lt.s32.totalorder %v806, 0
    %v808 = vsub.s32 0, %v806
    %v809 = vsel %vm807, %v808, %v806
    %v810 = vclz %v809
    %v811 = vsub.s32 %v810, 2
    %vm812 = vcmp.gt.s32.totalorder 0, %v811
    %v813 = vsel %vm812, 0, %v811
    %v814 = vsub.s32 32, %v813
    %v815 = vshll.u32 %v806, %v813
    %v816 = vshrl.u32 %v798, %v814
    %v817 = vor.u32 %v815, %v816
    %v818 = vsub.s32 4294967266, %v813
    %v819 = vadd.s32 %v818, 127
    %v820 = vshll.u32 %v819, 23
    %v821 = vor.u32 4788187, %v820
    %v822 = vand.u32 2147483647, %v821
    %v824 = vcvt.s32.f32 %v817
    %v825 = vmul.f32 %v824, %v822
    %v826 = vxor.u32 %v825, 2147483648
    %v827 = vsel %vm744, %v826, %v825
    %v828 = vsub.s32 4, %v804
    %v829 = vsel %vm744, %v828, %v804
    %v830 = vsel %vm743, %v218, %v827
    %v831 = vsel %vm743, 0, %v829
    %v832 = vcosq.f32.pop %v830
    %v833 = vsinq.f32.pop %v830
    %vm834 = vweird.f32 %v218
    %v835 = vadd.s32 %v831, 3
    %v836 = vand.u32 %v835, 3
    %vm837 = vcmp.lt.s32.totalorder %v836, 2
    %vm838 = vcmp.eq.s32.totalorder %v836, 0
    %v839 = vxor.u32 %v833, 2147483648
    %v840 = vsel %vm838, %v832, %v839
    %vm841 = vcmp.eq.s32.totalorder %v836, 2
    %v842 = vxor.u32 %v832, 2147483648
    %v843 = vsel %vm841, %v842, %v833
    %v844 = vsel %vm837, %v840, %v843
    %v845 = vsel %vm834, nan, %v844
    %v846 = vand.u32 2147483647, %v223
    %vm847 = vcmp.le.f32.partialorder %v846, 0.7853982
    %vm848 = vcmp.lt.s32.totalorder %v223, 0
    %v849 = vand.u32 %v223, 2139095040
    %v850 = vshrl.u32 %v849, 23
    %v851 = vsub.s32 %v850, 127
    %v852 = vand.u32 2147483647, %v223
    %v853 = vand.u32 %v852, 8388607
    %v854 = vor.u32 %v853, 8388608
    %v855 = vsub.s32 0, %v854
    %v856 = vadd.s32 %v851, 1
    %vm857 = vcmp.gt.s32.totalorder %v856, 0
    %v858 = vsel %vm857, %v856, 0
    %v859 = vshrl.u32 %v858, 5
    %v860 = vand.u32 %v858, 31
    %v861 = vsub.s32 32, %v860
    %v862 = vshrl.u32 683565275, %v861
    %v863 = vshll.u32 683565275, %v860
    %v864 = vshrl.u32 2475754826, %v861
    %v865 = vor.u32 %v863, %v864
    %v866 = vshll.u32 2475754826, %v860
    %v867 = vshrl.u32 2131351028, %v861
    %v868 = vor.u32 %v866, %v867
    %v869 = vshll.u32 2131351028, %v860
    %v870 = vshrl.u32 2102212464, %v861
    %v871 = vor.u32 %v869, %v870
    %v872 = vshll.u32 2102212464, %v860
    %v873 = vshrl.u32 920167782, %v861
    %v874 = vor.u32 %v872, %v873
    %v875 = vshll.u32 920167782, %v860
    %v876 = vshrl.u32 1326507024, %v861
    %v877 = vor.u32 %v875, %v876
    %vm878 = vcmp.lt.s32.totalorder %v859, 1
    %vm879 = vcmp.lt.s32.totalorder %v859, 2
    %vm880 = vcmp.lt.s32.totalorder %v859, 3
    %vm881 = vcmp.lt.s32.totalorder %v859, 4
    %v882 = vsel %vm878, %v862, %v865
    %v883 = vsel %vm881, %v871, 2102212464
    %v884 = vsel %vm880, %v868, %v883
    %v885 = vsel %vm879, %v882, %v884
    %v886 = vsel %vm878, %v865, %v868
    %v887 = vsel %vm881, %v874, 920167782
    %v888 = vsel %vm880, %v871, %v887
    %v889 = vsel %vm879, %v886, %v888
    %v890 = vsel %vm878, %v868, %v871
    %v891 = vsel %vm881, %v877, 1326507024
    %v892 = vsel %vm880, %v874, %v891
    %v893 = vsel %vm879, %v890, %v892
    %v894 = vshll.u32 %v854, 8
    %v895 = vmul.u32.u64.compose %v894, %v893
    %v896 = vextract.low.u32 %v895
    %v897 = vextract.high.u32 %v895
    %v898 = vmul.u32.u64.compose %v894, %v889
    %v899 = vextract.low.u32 %v898
    %v900 = vextract.high.u32 %v898
    %v901 = vmul.u32 %v894, %v885
    %v902 = vadd.s32 %v897, %v899
    %vm903 = vc.u32 %v897, %v899
    %v904 = vadd.s32 %v900, 1
    %v905 = vsel %vm903, %v904, %v900
    %v906 = vadd.s32 %v901, %v905
    %v907 = vadd.s32 %v906, 536870912
    %v908 = vshrl.u32 %v907, 30
    %v909 = vshll.u32 %v908, 30
    %v910 = vsub.s32 %v906, %v909
    %vm911 = vcmp.lt.s32.totalorder %v910, 0
    %v912 = vsub.s32 0, %v910
    %v913 = vsel %vm911, %v912, %v910
    %v914 = vclz %v913
    %v915 = vsub.s32 %v914, 2
    %vm916 = vcmp.gt.s32.totalorder 0, %v915
    %v917 = vsel %vm916, 0, %v915
    %v918 = vsub.s32 32, %v917
    %v919 = vshll.u32 %v910, %v917
    %v920 = vshrl.u32 %v902, %v918
    %v921 = vor.u32 %v919, %v920
    %v922 = vsub.s32 4294967266, %v917
    %v923 = vadd.s32 %v922, 127
    %v924 = vshll.u32 %v923, 23
    %v925 = vor.u32 4788187, %v924
    %v926 = vand.u32 2147483647, %v925
    %v928 = vcvt.s32.f32 %v921
    %v929 = vmul.f32 %v928, %v926
    %v930 = vxor.u32 %v929, 2147483648
    %v931 = vsel %vm848, %v930, %v929
    %v932 = vsub.s32 4, %v908
    %v933 = vsel %vm848, %v932, %v908
    %v934 = vsel %vm847, %v223, %v931
    %v935 = vsel %vm847, 0, %v933
    %v936 = vcosq.f32.pop %v934
    %v937 = vsinq.f32.pop %v934
    %vm938 = vweird.f32 %v223
    %v939 = vadd.s32 %v935, 3
    %v940 = vand.u32 %v939, 3
    %vm941 = vcmp.lt.s32.totalorder %v940, 2
    %vm942 = vcmp.eq.s32.totalorder %v940, 0
    %v943 = vxor.u32 %v937, 2147483648
    %v944 = vsel %vm942, %v936, %v943
    %vm945 = vcmp.eq.s32.totalorder %v940, 2
    %v946 = vxor.u32 %v936, 2147483648
    %v947 = vsel %vm945, %v946, %v937
    %v948 = vsel %vm941, %v944, %v947
    %v949 = vsel %vm938, nan, %v948
    %v950 = vand.u32 2147483647, %v228
    %vm951 = vcmp.le.f32.partialorder %v950, 0.7853982
    %vm952 = vcmp.lt.s32.totalorder %v228, 0
    %v953 = vand.u32 %v228, 2139095040
    %v954 = vshrl.u32 %v953, 23
    %v955 = vsub.s32 %v954, 127
    %v956 = vand.u32 2147483647, %v228
    %v957 = vand.u32 %v956, 8388607
    %v958 = vor.u32 %v957, 8388608
    %v959 = vsub.s32 0, %v958
    %v960 = vadd.s32 %v955, 1
    %vm961 = vcmp.gt.s32.totalorder %v960, 0
    %v962 = vsel %vm961, %v960, 0
    %v963 = vshrl.u32 %v962, 5
    %v964 = vand.u32 %v962, 31
    %v965 = vsub.s32 32, %v964
    %v966 = vshrl.u32 683565275, %v965
    %v967 = vshll.u32 683565275, %v964
    %v968 = vshrl.u32 2475754826, %v965
    %v969 = vor.u32 %v967, %v968
    %v970 = vshll.u32 2475754826, %v964
    %v971 = vshrl.u32 2131351028, %v965
    %v972 = vor.u32 %v970, %v971
    %v973 = vshll.u32 2131351028, %v964
    %v974 = vshrl.u32 2102212464, %v965
    %v975 = vor.u32 %v973, %v974
    %v976 = vshll.u32 2102212464, %v964
    %v977 = vshrl.u32 920167782, %v965
    %v978 = vor.u32 %v976, %v977
    %v979 = vshll.u32 920167782, %v964
    %v980 = vshrl.u32 1326507024, %v965
    %v981 = vor.u32 %v979, %v980
    %vm982 = vcmp.lt.s32.totalorder %v963, 1
    %vm983 = vcmp.lt.s32.totalorder %v963, 2
    %vm984 = vcmp.lt.s32.totalorder %v963, 3
    %vm985 = vcmp.lt.s32.totalorder %v963, 4
    %v986 = vsel %vm982, %v966, %v969
    %v987 = vsel %vm985, %v975, 2102212464
    %v988 = vsel %vm984, %v972, %v987
    %v989 = vsel %vm983, %v986, %v988
    %v990 = vsel %vm982, %v969, %v972
    %v991 = vsel %vm985, %v978, 920167782
    %v992 = vsel %vm984, %v975, %v991
    %v993 = vsel %vm983, %v990, %v992
    %v994 = vsel %vm982, %v972, %v975
    %v995 = vsel %vm985, %v981, 1326507024
    %v996 = vsel %vm984, %v978, %v995
    %v997 = vsel %vm983, %v994, %v996
    %v998 = vshll.u32 %v958, 8
    %v999 = vmul.u32.u64.compose %v998, %v997
    %v1000 = vextract.low.u32 %v999
    %v1001 = vextract.high.u32 %v999
    %v1002 = vmul.u32.u64.compose %v998, %v993
    %v1003 = vextract.low.u32 %v1002
    %v1004 = vextract.high.u32 %v1002
    %v1005 = vmul.u32 %v998, %v989
    %v1006 = vadd.s32 %v1001, %v1003
    %vm1007 = vc.u32 %v1001, %v1003
    %v1008 = vadd.s32 %v1004, 1
    %v1009 = vsel %vm1007, %v1008, %v1004
    %v1010 = vadd.s32 %v1005, %v1009
    %v1011 = vadd.s32 %v1010, 536870912
    %v1012 = vshrl.u32 %v1011, 30
    %v1013 = vshll.u32 %v1012, 30
    %v1014 = vsub.s32 %v1010, %v1013
    %vm1015 = vcmp.lt.s32.totalorder %v1014, 0
    %v1016 = vsub.s32 0, %v1014
    %v1017 = vsel %vm1015, %v1016, %v1014
    %v1018 = vclz %v1017
    %v1019 = vsub.s32 %v1018, 2
    %vm1020 = vcmp.gt.s32.totalorder 0, %v1019
    %v1021 = vsel %vm1020, 0, %v1019
    %v1022 = vsub.s32 32, %v1021
    %v1023 = vshll.u32 %v1014, %v1021
    %v1024 = vshrl.u32 %v1006, %v1022
    %v1025 = vor.u32 %v1023, %v1024
    %v1026 = vsub.s32 4294967266, %v1021
    %v1027 = vadd.s32 %v1026, 127
    %v1028 = vshll.u32 %v1027, 23
    %v1029 = vor.u32 4788187, %v1028
    %v1030 = vand.u32 2147483647, %v1029
    %v1032 = vcvt.s32.f32 %v1025
    %v1033 = vmul.f32 %v1032, %v1030
    %v1034 = vxor.u32 %v1033, 2147483648
    %v1035 = vsel %vm952, %v1034, %v1033
    %v1036 = vsub.s32 4, %v1012
    %v1037 = vsel %vm952, %v1036, %v1012
    %v1038 = vsel %vm951, %v228, %v1035
    %v1039 = vsel %vm951, 0, %v1037
    %v1040 = vcosq.f32.pop %v1038
    %v1041 = vsinq.f32.pop %v1038
    %vm1042 = vweird.f32 %v228
    %v1043 = vadd.s32 %v1039, 3
    %v1044 = vand.u32 %v1043, 3
    %vm1045 = vcmp.lt.s32.totalorder %v1044, 2
    %vm1046 = vcmp.eq.s32.totalorder %v1044, 0
    %v1047 = vxor.u32 %v1041, 2147483648
    %v1048 = vsel %vm1046, %v1040, %v1047
    %vm1049 = vcmp.eq.s32.totalorder %v1044, 2
    %v1050 = vxor.u32 %v1040, 2147483648
    %v1051 = vsel %vm1049, %v1050, %v1041
    %v1052 = vsel %vm1045, %v1048, %v1051
    %v1053 = vsel %vm1042, nan, %v1052
    %v1054 = vand.u32 2147483647, %v233
    %vm1055 = vcmp.le.f32.partialorder %v1054, 0.7853982
    %vm1056 = vcmp.lt.s32.totalorder %v233, 0
    %v1057 = vand.u32 %v233, 2139095040
    %v1058 = vshrl.u32 %v1057, 23
    %v1059 = vsub.s32 %v1058, 127
    %v1060 = vand.u32 2147483647, %v233
    %v1061 = vand.u32 %v1060, 8388607
    %v1062 = vor.u32 %v1061, 8388608
    %v1063 = vsub.s32 0, %v1062
    %v1064 = vadd.s32 %v1059, 1
    %vm1065 = vcmp.gt.s32.totalorder %v1064, 0
    %v1066 = vsel %vm1065, %v1064, 0
    %v1067 = vshrl.u32 %v1066, 5
    %v1068 = vand.u32 %v1066, 31
    %v1069 = vsub.s32 32, %v1068
    %v1070 = vshrl.u32 683565275, %v1069
    %v1071 = vshll.u32 683565275, %v1068
    %v1072 = vshrl.u32 2475754826, %v1069
    %v1073 = vor.u32 %v1071, %v1072
    %v1074 = vshll.u32 2475754826, %v1068
    %v1075 = vshrl.u32 2131351028, %v1069
    %v1076 = vor.u32 %v1074, %v1075
    %v1077 = vshll.u32 2131351028, %v1068
    %v1078 = vshrl.u32 2102212464, %v1069
    %v1079 = vor.u32 %v1077, %v1078
    %v1080 = vshll.u32 2102212464, %v1068
    %v1081 = vshrl.u32 920167782, %v1069
    %v1082 = vor.u32 %v1080, %v1081
    %v1083 = vshll.u32 920167782, %v1068
    %v1084 = vshrl.u32 1326507024, %v1069
    %v1085 = vor.u32 %v1083, %v1084
    %vm1086 = vcmp.lt.s32.totalorder %v1067, 1
    %vm1087 = vcmp.lt.s32.totalorder %v1067, 2
    %vm1088 = vcmp.lt.s32.totalorder %v1067, 3
    %vm1089 = vcmp.lt.s32.totalorder %v1067, 4
    %v1090 = vsel %vm1086, %v1070, %v1073
    %v1091 = vsel %vm1089, %v1079, 2102212464
    %v1092 = vsel %vm1088, %v1076, %v1091
    %v1093 = vsel %vm1087, %v1090, %v1092
    %v1094 = vsel %vm1086, %v1073, %v1076
    %v1095 = vsel %vm1089, %v1082, 920167782
    %v1096 = vsel %vm1088, %v1079, %v1095
    %v1097 = vsel %vm1087, %v1094, %v1096
    %v1098 = vsel %vm1086, %v1076, %v1079
    %v1099 = vsel %vm1089, %v1085, 1326507024
    %v1100 = vsel %vm1088, %v1082, %v1099
    %v1101 = vsel %vm1087, %v1098, %v1100
    %v1102 = vshll.u32 %v1062, 8
    %v1103 = vmul.u32.u64.compose %v1102, %v1101
    %v1104 = vextract.low.u32 %v1103
    %v1105 = vextract.high.u32 %v1103
    %v1106 = vmul.u32.u64.compose %v1102, %v1097
    %v1107 = vextract.low.u32 %v1106
    %v1108 = vextract.high.u32 %v1106
    %v1109 = vmul.u32 %v1102, %v1093
    %v1110 = vadd.s32 %v1105, %v1107
    %vm1111 = vc.u32 %v1105, %v1107
    %v1112 = vadd.s32 %v1108, 1
    %v1113 = vsel %vm1111, %v1112, %v1108
    %v1114 = vadd.s32 %v1109, %v1113
    %v1115 = vadd.s32 %v1114, 536870912
    %v1116 = vshrl.u32 %v1115, 30
    %v1117 = vshll.u32 %v1116, 30
    %v1118 = vsub.s32 %v1114, %v1117
    %vm1119 = vcmp.lt.s32.totalorder %v1118, 0
    %v1120 = vsub.s32 0, %v1118
    %v1121 = vsel %vm1119, %v1120, %v1118
    %v1122 = vclz %v1121
    %v1123 = vsub.s32 %v1122, 2
    %vm1124 = vcmp.gt.s32.totalorder 0, %v1123
    %v1125 = vsel %vm1124, 0, %v1123
    %v1126 = vsub.s32 32, %v1125
    %v1127 = vshll.u32 %v1118, %v1125
    %v1128 = vshrl.u32 %v1110, %v1126
    %v1129 = vor.u32 %v1127, %v1128
    %v1130 = vsub.s32 4294967266, %v1125
    %v1131 = vadd.s32 %v1130, 127
    %v1132 = vshll.u32 %v1131, 23
    %v1133 = vor.u32 4788187, %v1132
    %v1134 = vand.u32 2147483647, %v1133
    %v1136 = vcvt.s32.f32 %v1129
    %v1137 = vmul.f32 %v1136, %v1134
    %v1138 = vxor.u32 %v1137, 2147483648
    %v1139 = vsel %vm1056, %v1138, %v1137
    %v1140 = vsub.s32 4, %v1116
    %v1141 = vsel %vm1056, %v1140, %v1116
    %v1142 = vsel %vm1055, %v233, %v1139
    %v1143 = vsel %vm1055, 0, %v1141
    %v1144 = vcosq.f32.pop %v1142
    %v1145 = vsinq.f32.pop %v1142
    %vm1146 = vweird.f32 %v233
    %v1147 = vadd.s32 %v1143, 3
    %v1148 = vand.u32 %v1147, 3
    %vm1149 = vcmp.lt.s32.totalorder %v1148, 2
    %vm1150 = vcmp.eq.s32.totalorder %v1148, 0
    %v1151 = vxor.u32 %v1145, 2147483648
    %v1152 = vsel %vm1150, %v1144, %v1151
    %vm1153 = vcmp.eq.s32.totalorder %v1148, 2
    %v1154 = vxor.u32 %v1144, 2147483648
    %v1155 = vsel %vm1153, %v1154, %v1145
    %v1156 = vsel %vm1149, %v1152, %v1155
    %v1157 = vsel %vm1146, nan, %v1156
    %v1158 = vand.u32 2147483647, %v238
    %vm1159 = vcmp.le.f32.partialorder %v1158, 0.7853982
    %vm1160 = vcmp.lt.s32.totalorder %v238, 0
    %v1161 = vand.u32 %v238, 2139095040
    %v1162 = vshrl.u32 %v1161, 23
    %v1163 = vsub.s32 %v1162, 127
    %v1164 = vand.u32 2147483647, %v238
    %v1165 = vand.u32 %v1164, 8388607
    %v1166 = vor.u32 %v1165, 8388608
    %v1167 = vsub.s32 0, %v1166
    %v1168 = vadd.s32 %v1163, 1
    %vm1169 = vcmp.gt.s32.totalorder %v1168, 0
    %v1170 = vsel %vm1169, %v1168, 0
    %v1171 = vshrl.u32 %v1170, 5
    %v1172 = vand.u32 %v1170, 31
    %v1173 = vsub.s32 32, %v1172
    %v1174 = vshrl.u32 683565275, %v1173
    %v1175 = vshll.u32 683565275, %v1172
    %v1176 = vshrl.u32 2475754826, %v1173
    %v1177 = vor.u32 %v1175, %v1176
    %v1178 = vshll.u32 2475754826, %v1172
    %v1179 = vshrl.u32 2131351028, %v1173
    %v1180 = vor.u32 %v1178, %v1179
    %v1181 = vshll.u32 2131351028, %v1172
    %v1182 = vshrl.u32 2102212464, %v1173
    %v1183 = vor.u32 %v1181, %v1182
    %v1184 = vshll.u32 2102212464, %v1172
    %v1185 = vshrl.u32 920167782, %v1173
    %v1186 = vor.u32 %v1184, %v1185
    %v1187 = vshll.u32 920167782, %v1172
    %v1188 = vshrl.u32 1326507024, %v1173
    %v1189 = vor.u32 %v1187, %v1188
    %vm1190 = vcmp.lt.s32.totalorder %v1171, 1
    %vm1191 = vcmp.lt.s32.totalorder %v1171, 2
    %vm1192 = vcmp.lt.s32.totalorder %v1171, 3
    %vm1193 = vcmp.lt.s32.totalorder %v1171, 4
    %v1194 = vsel %vm1190, %v1174, %v1177
    %v1195 = vsel %vm1193, %v1183, 2102212464
    %v1196 = vsel %vm1192, %v1180, %v1195
    %v1197 = vsel %vm1191, %v1194, %v1196
    %v1198 = vsel %vm1190, %v1177, %v1180
    %v1199 = vsel %vm1193, %v1186, 920167782
    %v1200 = vsel %vm1192, %v1183, %v1199
    %v1201 = vsel %vm1191, %v1198, %v1200
    %v1202 = vsel %vm1190, %v1180, %v1183
    %v1203 = vsel %vm1193, %v1189, 1326507024
    %v1204 = vsel %vm1192, %v1186, %v1203
    %v1205 = vsel %vm1191, %v1202, %v1204
    %v1206 = vshll.u32 %v1166, 8
    %v1207 = vmul.u32.u64.compose %v1206, %v1205
    %v1208 = vextract.low.u32 %v1207
    %v1209 = vextract.high.u32 %v1207
    %v1210 = vmul.u32.u64.compose %v1206, %v1201
    %v1211 = vextract.low.u32 %v1210
    %v1212 = vextract.high.u32 %v1210
    %v1213 = vmul.u32 %v1206, %v1197
    %v1214 = vadd.s32 %v1209, %v1211
    %vm1215 = vc.u32 %v1209, %v1211
    %v1216 = vadd.s32 %v1212, 1
    %v1217 = vsel %vm1215, %v1216, %v1212
    %v1218 = vadd.s32 %v1213, %v1217
    %v1219 = vadd.s32 %v1218, 536870912
    %v1220 = vshrl.u32 %v1219, 30
    %v1221 = vshll.u32 %v1220, 30
    %v1222 = vsub.s32 %v1218, %v1221
    %vm1223 = vcmp.lt.s32.totalorder %v1222, 0
    %v1224 = vsub.s32 0, %v1222
    %v1225 = vsel %vm1223, %v1224, %v1222
    %v1226 = vclz %v1225
    %v1227 = vsub.s32 %v1226, 2
    %vm1228 = vcmp.gt.s32.totalorder 0, %v1227
    %v1229 = vsel %vm1228, 0, %v1227
    %v1230 = vsub.s32 32, %v1229
    %v1231 = vshll.u32 %v1222, %v1229
    %v1232 = vshrl.u32 %v1214, %v1230
    %v1233 = vor.u32 %v1231, %v1232
    %v1234 = vsub.s32 4294967266, %v1229
    %v1235 = vadd.s32 %v1234, 127
    %v1236 = vshll.u32 %v1235, 23
    %v1237 = vor.u32 4788187, %v1236
    %v1238 = vand.u32 2147483647, %v1237
    %v1240 = vcvt.s32.f32 %v1233
    %v1241 = vmul.f32 %v1240, %v1238
    %v1242 = vxor.u32 %v1241, 2147483648
    %v1243 = vsel %vm1160, %v1242, %v1241
    %v1244 = vsub.s32 4, %v1220
    %v1245 = vsel %vm1160, %v1244, %v1220
    %v1246 = vsel %vm1159, %v238, %v1243
    %v1247 = vsel %vm1159, 0, %v1245
    %v1248 = vcosq.f32.pop %v1246
    %v1249 = vsinq.f32.pop %v1246
    %vm1250 = vweird.f32 %v238
    %v1251 = vadd.s32 %v1247, 3
    %v1252 = vand.u32 %v1251, 3
    %vm1253 = vcmp.lt.s32.totalorder %v1252, 2
    %vm1254 = vcmp.eq.s32.totalorder %v1252, 0
    %v1255 = vxor.u32 %v1249, 2147483648
    %v1256 = vsel %vm1254, %v1248, %v1255
    %vm1257 = vcmp.eq.s32.totalorder %v1252, 2
    %v1258 = vxor.u32 %v1248, 2147483648
    %v1259 = vsel %vm1257, %v1258, %v1249
    %v1260 = vsel %vm1253, %v1256, %v1259
    %v1261 = vsel %vm1250, nan, %v1260
    %v1262 = vand.u32 2147483647, %v243
    %vm1263 = vcmp.le.f32.partialorder %v1262, 0.7853982
    %vm1264 = vcmp.lt.s32.totalorder %v243, 0
    %v1265 = vand.u32 %v243, 2139095040
    %v1266 = vshrl.u32 %v1265, 23
    %v1267 = vsub.s32 %v1266, 127
    %v1268 = vand.u32 2147483647, %v243
    %v1269 = vand.u32 %v1268, 8388607
    %v1270 = vor.u32 %v1269, 8388608
    %v1271 = vsub.s32 0, %v1270
    %v1272 = vadd.s32 %v1267, 1
    %vm1273 = vcmp.gt.s32.totalorder %v1272, 0
    %v1274 = vsel %vm1273, %v1272, 0
    %v1275 = vshrl.u32 %v1274, 5
    %v1276 = vand.u32 %v1274, 31
    %v1277 = vsub.s32 32, %v1276
    %v1278 = vshrl.u32 683565275, %v1277
    %v1279 = vshll.u32 683565275, %v1276
    %v1280 = vshrl.u32 2475754826, %v1277
    %v1281 = vor.u32 %v1279, %v1280
    %v1282 = vshll.u32 2475754826, %v1276
    %v1283 = vshrl.u32 2131351028, %v1277
    %v1284 = vor.u32 %v1282, %v1283
    %v1285 = vshll.u32 2131351028, %v1276
    %v1286 = vshrl.u32 2102212464, %v1277
    %v1287 = vor.u32 %v1285, %v1286
    %v1288 = vshll.u32 2102212464, %v1276
    %v1289 = vshrl.u32 920167782, %v1277
    %v1290 = vor.u32 %v1288, %v1289
    %v1291 = vshll.u32 920167782, %v1276
    %v1292 = vshrl.u32 1326507024, %v1277
    %v1293 = vor.u32 %v1291, %v1292
    %vm1294 = vcmp.lt.s32.totalorder %v1275, 1
    %vm1295 = vcmp.lt.s32.totalorder %v1275, 2
    %vm1296 = vcmp.lt.s32.totalorder %v1275, 3
    %vm1297 = vcmp.lt.s32.totalorder %v1275, 4
    %v1298 = vsel %vm1294, %v1278, %v1281
    %v1299 = vsel %vm1297, %v1287, 2102212464
    %v1300 = vsel %vm1296, %v1284, %v1299
    %v1301 = vsel %vm1295, %v1298, %v1300
    %v1302 = vsel %vm1294, %v1281, %v1284
    %v1303 = vsel %vm1297, %v1290, 920167782
    %v1304 = vsel %vm1296, %v1287, %v1303
    %v1305 = vsel %vm1295, %v1302, %v1304
    %v1306 = vsel %vm1294, %v1284, %v1287
    %v1307 = vsel %vm1297, %v1293, 1326507024
    %v1308 = vsel %vm1296, %v1290, %v1307
    %v1309 = vsel %vm1295, %v1306, %v1308
    %v1310 = vshll.u32 %v1270, 8
    %v1311 = vmul.u32.u64.compose %v1310, %v1309
    %v1312 = vextract.low.u32 %v1311
    %v1313 = vextract.high.u32 %v1311
    %v1314 = vmul.u32.u64.compose %v1310, %v1305
    %v1315 = vextract.low.u32 %v1314
    %v1316 = vextract.high.u32 %v1314
    %v1317 = vmul.u32 %v1310, %v1301
    %v1318 = vadd.s32 %v1313, %v1315
    %vm1319 = vc.u32 %v1313, %v1315
    %v1320 = vadd.s32 %v1316, 1
    %v1321 = vsel %vm1319, %v1320, %v1316
    %v1322 = vadd.s32 %v1317, %v1321
    %v1323 = vadd.s32 %v1322, 536870912
    %v1324 = vshrl.u32 %v1323, 30
    %v1325 = vshll.u32 %v1324, 30
    %v1326 = vsub.s32 %v1322, %v1325
    %vm1327 = vcmp.lt.s32.totalorder %v1326, 0
    %v1328 = vsub.s32 0, %v1326
    %v1329 = vsel %vm1327, %v1328, %v1326
    %v1330 = vclz %v1329
    %v1331 = vsub.s32 %v1330, 2
    %vm1332 = vcmp.gt.s32.totalorder 0, %v1331
    %v1333 = vsel %vm1332, 0, %v1331
    %v1334 = vsub.s32 32, %v1333
    %v1335 = vshll.u32 %v1326, %v1333
    %v1336 = vshrl.u32 %v1318, %v1334
    %v1337 = vor.u32 %v1335, %v1336
    %v1338 = vsub.s32 4294967266, %v1333
    %v1339 = vadd.s32 %v1338, 127
    %v1340 = vshll.u32 %v1339, 23
    %v1341 = vor.u32 4788187, %v1340
    %v1342 = vand.u32 2147483647, %v1341
    %v1344 = vcvt.s32.f32 %v1337
    %v1345 = vmul.f32 %v1344, %v1342
    %v1346 = vxor.u32 %v1345, 2147483648
    %v1347 = vsel %vm1264, %v1346, %v1345
    %v1348 = vsub.s32 4, %v1324
    %v1349 = vsel %vm1264, %v1348, %v1324
    %v1350 = vsel %vm1263, %v243, %v1347
    %v1351 = vsel %vm1263, 0, %v1349
    %v1352 = vcosq.f32.pop %v1350
    %v1353 = vsinq.f32.pop %v1350
    %vm1354 = vweird.f32 %v243
    %v1355 = vadd.s32 %v1351, 3
    %v1356 = vand.u32 %v1355, 3
    %vm1357 = vcmp.lt.s32.totalorder %v1356, 2
    %vm1358 = vcmp.eq.s32.totalorder %v1356, 0
    %v1359 = vxor.u32 %v1353, 2147483648
    %v1360 = vsel %vm1358, %v1352, %v1359
    %vm1361 = vcmp.eq.s32.totalorder %v1356, 2
    %v1362 = vxor.u32 %v1352, 2147483648
    %v1363 = vsel %vm1361, %v1362, %v1353
    %v1364 = vsel %vm1357, %v1360, %v1363
    %v1365 = vsel %vm1354, nan, %v1364
    %v1366 = vand.u32 2147483647, %v248
    %vm1367 = vcmp.le.f32.partialorder %v1366, 0.7853982
    %vm1368 = vcmp.lt.s32.totalorder %v248, 0
    %v1369 = vand.u32 %v248, 2139095040
    %v1370 = vshrl.u32 %v1369, 23
    %v1371 = vsub.s32 %v1370, 127
    %v1372 = vand.u32 2147483647, %v248
    %v1373 = vand.u32 %v1372, 8388607
    %v1374 = vor.u32 %v1373, 8388608
    %v1375 = vsub.s32 0, %v1374
    %v1376 = vadd.s32 %v1371, 1
    %vm1377 = vcmp.gt.s32.totalorder %v1376, 0
    %v1378 = vsel %vm1377, %v1376, 0
    %v1379 = vshrl.u32 %v1378, 5
    %v1380 = vand.u32 %v1378, 31
    %v1381 = vsub.s32 32, %v1380
    %v1382 = vshrl.u32 683565275, %v1381
    %v1383 = vshll.u32 683565275, %v1380
    %v1384 = vshrl.u32 2475754826, %v1381
    %v1385 = vor.u32 %v1383, %v1384
    %v1386 = vshll.u32 2475754826, %v1380
    %v1387 = vshrl.u32 2131351028, %v1381
    %v1388 = vor.u32 %v1386, %v1387
    %v1389 = vshll.u32 2131351028, %v1380
    %v1390 = vshrl.u32 2102212464, %v1381
    %v1391 = vor.u32 %v1389, %v1390
    %v1392 = vshll.u32 2102212464, %v1380
    %v1393 = vshrl.u32 920167782, %v1381
    %v1394 = vor.u32 %v1392, %v1393
    %v1395 = vshll.u32 920167782, %v1380
    %v1396 = vshrl.u32 1326507024, %v1381
    %v1397 = vor.u32 %v1395, %v1396
    %vm1398 = vcmp.lt.s32.totalorder %v1379, 1
    %vm1399 = vcmp.lt.s32.totalorder %v1379, 2
    %vm1400 = vcmp.lt.s32.totalorder %v1379, 3
    %vm1401 = vcmp.lt.s32.totalorder %v1379, 4
    %v1402 = vsel %vm1398, %v1382, %v1385
    %v1403 = vsel %vm1401, %v1391, 2102212464
    %v1404 = vsel %vm1400, %v1388, %v1403
    %v1405 = vsel %vm1399, %v1402, %v1404
    %v1406 = vsel %vm1398, %v1385, %v1388
    %v1407 = vsel %vm1401, %v1394, 920167782
    %v1408 = vsel %vm1400, %v1391, %v1407
    %v1409 = vsel %vm1399, %v1406, %v1408
    %v1410 = vsel %vm1398, %v1388, %v1391
    %v1411 = vsel %vm1401, %v1397, 1326507024
    %v1412 = vsel %vm1400, %v1394, %v1411
    %v1413 = vsel %vm1399, %v1410, %v1412
    %v1414 = vshll.u32 %v1374, 8
    %v1415 = vmul.u32.u64.compose %v1414, %v1413
    %v1416 = vextract.low.u32 %v1415
    %v1417 = vextract.high.u32 %v1415
    %v1418 = vmul.u32.u64.compose %v1414, %v1409
    %v1419 = vextract.low.u32 %v1418
    %v1420 = vextract.high.u32 %v1418
    %v1421 = vmul.u32 %v1414, %v1405
    %v1422 = vadd.s32 %v1417, %v1419
    %vm1423 = vc.u32 %v1417, %v1419
    %v1424 = vadd.s32 %v1420, 1
    %v1425 = vsel %vm1423, %v1424, %v1420
    %v1426 = vadd.s32 %v1421, %v1425
    %v1427 = vadd.s32 %v1426, 536870912
    %v1428 = vshrl.u32 %v1427, 30
    %v1429 = vshll.u32 %v1428, 30
    %v1430 = vsub.s32 %v1426, %v1429
    %vm1431 = vcmp.lt.s32.totalorder %v1430, 0
    %v1432 = vsub.s32 0, %v1430
    %v1433 = vsel %vm1431, %v1432, %v1430
    %v1434 = vclz %v1433
    %v1435 = vsub.s32 %v1434, 2
    %vm1436 = vcmp.gt.s32.totalorder 0, %v1435
    %v1437 = vsel %vm1436, 0, %v1435
    %v1438 = vsub.s32 32, %v1437
    %v1439 = vshll.u32 %v1430, %v1437
    %v1440 = vshrl.u32 %v1422, %v1438
    %v1441 = vor.u32 %v1439, %v1440
    %v1442 = vsub.s32 4294967266, %v1437
    %v1443 = vadd.s32 %v1442, 127
    %v1444 = vshll.u32 %v1443, 23
    %v1445 = vor.u32 4788187, %v1444
    %v1446 = vand.u32 2147483647, %v1445
    %v1448 = vcvt.s32.f32 %v1441
    %v1449 = vmul.f32 %v1448, %v1446
    %v1450 = vxor.u32 %v1449, 2147483648
    %v1451 = vsel %vm1368, %v1450, %v1449
    %v1452 = vsub.s32 4, %v1428
    %v1453 = vsel %vm1368, %v1452, %v1428
    %v1454 = vsel %vm1367, %v248, %v1451
    %v1455 = vsel %vm1367, 0, %v1453
    %v1456 = vcosq.f32.pop %v1454
    %v1457 = vsinq.f32.pop %v1454
    %vm1458 = vweird.f32 %v248
    %v1459 = vadd.s32 %v1455, 3
    %v1460 = vand.u32 %v1459, 3
    %vm1461 = vcmp.lt.s32.totalorder %v1460, 2
    %vm1462 = vcmp.eq.s32.totalorder %v1460, 0
    %v1463 = vxor.u32 %v1457, 2147483648
    %v1464 = vsel %vm1462, %v1456, %v1463
    %vm1465 = vcmp.eq.s32.totalorder %v1460, 2
    %v1466 = vxor.u32 %v1456, 2147483648
    %v1467 = vsel %vm1465, %v1466, %v1457
    %v1468 = vsel %vm1461, %v1464, %v1467
    %v1469 = vsel %vm1458, nan, %v1468
    %v1470 = vand.u32 2147483647, %v253
    %vm1471 = vcmp.le.f32.partialorder %v1470, 0.7853982
    %vm1472 = vcmp.lt.s32.totalorder %v253, 0
    %v1473 = vand.u32 %v253, 2139095040
    %v1474 = vshrl.u32 %v1473, 23
    %v1475 = vsub.s32 %v1474, 127
    %v1476 = vand.u32 2147483647, %v253
    %v1477 = vand.u32 %v1476, 8388607
    %v1478 = vor.u32 %v1477, 8388608
    %v1479 = vsub.s32 0, %v1478
    %v1480 = vadd.s32 %v1475, 1
    %vm1481 = vcmp.gt.s32.totalorder %v1480, 0
    %v1482 = vsel %vm1481, %v1480, 0
    %v1483 = vshrl.u32 %v1482, 5
    %v1484 = vand.u32 %v1482, 31
    %v1485 = vsub.s32 32, %v1484
    %v1486 = vshrl.u32 683565275, %v1485
    %v1487 = vshll.u32 683565275, %v1484
    %v1488 = vshrl.u32 2475754826, %v1485
    %v1489 = vor.u32 %v1487, %v1488
    %v1490 = vshll.u32 2475754826, %v1484
    %v1491 = vshrl.u32 2131351028, %v1485
    %v1492 = vor.u32 %v1490, %v1491
    %v1493 = vshll.u32 2131351028, %v1484
    %v1494 = vshrl.u32 2102212464, %v1485
    %v1495 = vor.u32 %v1493, %v1494
    %v1496 = vshll.u32 2102212464, %v1484
    %v1497 = vshrl.u32 920167782, %v1485
    %v1498 = vor.u32 %v1496, %v1497
    %v1499 = vshll.u32 920167782, %v1484
    %v1500 = vshrl.u32 1326507024, %v1485
    %v1501 = vor.u32 %v1499, %v1500
    %vm1502 = vcmp.lt.s32.totalorder %v1483, 1
    %vm1503 = vcmp.lt.s32.totalorder %v1483, 2
    %vm1504 = vcmp.lt.s32.totalorder %v1483, 3
    %vm1505 = vcmp.lt.s32.totalorder %v1483, 4
    %v1506 = vsel %vm1502, %v1486, %v1489
    %v1507 = vsel %vm1505, %v1495, 2102212464
    %v1508 = vsel %vm1504, %v1492, %v1507
    %v1509 = vsel %vm1503, %v1506, %v1508
    %v1510 = vsel %vm1502, %v1489, %v1492
    %v1511 = vsel %vm1505, %v1498, 920167782
    %v1512 = vsel %vm1504, %v1495, %v1511
    %v1513 = vsel %vm1503, %v1510, %v1512
    %v1514 = vsel %vm1502, %v1492, %v1495
    %v1515 = vsel %vm1505, %v1501, 1326507024
    %v1516 = vsel %vm1504, %v1498, %v1515
    %v1517 = vsel %vm1503, %v1514, %v1516
    %v1518 = vshll.u32 %v1478, 8
    %v1519 = vmul.u32.u64.compose %v1518, %v1517
    %v1520 = vextract.low.u32 %v1519
    %v1521 = vextract.high.u32 %v1519
    %v1522 = vmul.u32.u64.compose %v1518, %v1513
    %v1523 = vextract.low.u32 %v1522
    %v1524 = vextract.high.u32 %v1522
    %v1525 = vmul.u32 %v1518, %v1509
    %v1526 = vadd.s32 %v1521, %v1523
    %vm1527 = vc.u32 %v1521, %v1523
    %v1528 = vadd.s32 %v1524, 1
    %v1529 = vsel %vm1527, %v1528, %v1524
    %v1530 = vadd.s32 %v1525, %v1529
    %v1531 = vadd.s32 %v1530, 536870912
    %v1532 = vshrl.u32 %v1531, 30
    %v1533 = vshll.u32 %v1532, 30
    %v1534 = vsub.s32 %v1530, %v1533
    %vm1535 = vcmp.lt.s32.totalorder %v1534, 0
    %v1536 = vsub.s32 0, %v1534
    %v1537 = vsel %vm1535, %v1536, %v1534
    %v1538 = vclz %v1537
    %v1539 = vsub.s32 %v1538, 2
    %vm1540 = vcmp.gt.s32.totalorder 0, %v1539
    %v1541 = vsel %vm1540, 0, %v1539
    %v1542 = vsub.s32 32, %v1541
    %v1543 = vshll.u32 %v1534, %v1541
    %v1544 = vshrl.u32 %v1526, %v1542
    %v1545 = vor.u32 %v1543, %v1544
    %v1546 = vsub.s32 4294967266, %v1541
    %v1547 = vadd.s32 %v1546, 127
    %v1548 = vshll.u32 %v1547, 23
    %v1549 = vor.u32 4788187, %v1548
    %v1550 = vand.u32 2147483647, %v1549
    %v1552 = vcvt.s32.f32 %v1545
    %v1553 = vmul.f32 %v1552, %v1550
    %v1554 = vxor.u32 %v1553, 2147483648
    %v1555 = vsel %vm1472, %v1554, %v1553
    %v1556 = vsub.s32 4, %v1532
    %v1557 = vsel %vm1472, %v1556, %v1532
    %v1558 = vsel %vm1471, %v253, %v1555
    %v1559 = vsel %vm1471, 0, %v1557
    %v1560 = vcosq.f32.pop %v1558
    %v1561 = vsinq.f32.pop %v1558
    %vm1562 = vweird.f32 %v253
    %v1563 = vadd.s32 %v1559, 3
    %v1564 = vand.u32 %v1563, 3
    %vm1565 = vcmp.lt.s32.totalorder %v1564, 2
    %vm1566 = vcmp.eq.s32.totalorder %v1564, 0
    %v1567 = vxor.u32 %v1561, 2147483648
    %v1568 = vsel %vm1566, %v1560, %v1567
    %vm1569 = vcmp.eq.s32.totalorder %v1564, 2
    %v1570 = vxor.u32 %v1560, 2147483648
    %v1571 = vsel %vm1569, %v1570, %v1561
    %v1572 = vsel %vm1565, %v1568, %v1571
    %v1573 = vsel %vm1562, nan, %v1572
    %v1574 = vand.u32 2147483647, %v258
    %vm1575 = vcmp.le.f32.partialorder %v1574, 0.7853982
    %vm1576 = vcmp.lt.s32.totalorder %v258, 0
    %v1577 = vand.u32 %v258, 2139095040
    %v1578 = vshrl.u32 %v1577, 23
    %v1579 = vsub.s32 %v1578, 127
    %v1580 = vand.u32 2147483647, %v258
    %v1581 = vand.u32 %v1580, 8388607
    %v1582 = vor.u32 %v1581, 8388608
    %v1583 = vsub.s32 0, %v1582
    %v1584 = vadd.s32 %v1579, 1
    %vm1585 = vcmp.gt.s32.totalorder %v1584, 0
    %v1586 = vsel %vm1585, %v1584, 0
    %v1587 = vshrl.u32 %v1586, 5
    %v1588 = vand.u32 %v1586, 31
    %v1589 = vsub.s32 32, %v1588
    %v1590 = vshrl.u32 683565275, %v1589
    %v1591 = vshll.u32 683565275, %v1588
    %v1592 = vshrl.u32 2475754826, %v1589
    %v1593 = vor.u32 %v1591, %v1592
    %v1594 = vshll.u32 2475754826, %v1588
    %v1595 = vshrl.u32 2131351028, %v1589
    %v1596 = vor.u32 %v1594, %v1595
    %v1597 = vshll.u32 2131351028, %v1588
    %v1598 = vshrl.u32 2102212464, %v1589
    %v1599 = vor.u32 %v1597, %v1598
    %v1600 = vshll.u32 2102212464, %v1588
    %v1601 = vshrl.u32 920167782, %v1589
    %v1602 = vor.u32 %v1600, %v1601
    %v1603 = vshll.u32 920167782, %v1588
    %v1604 = vshrl.u32 1326507024, %v1589
    %v1605 = vor.u32 %v1603, %v1604
    %vm1606 = vcmp.lt.s32.totalorder %v1587, 1
    %vm1607 = vcmp.lt.s32.totalorder %v1587, 2
    %vm1608 = vcmp.lt.s32.totalorder %v1587, 3
    %vm1609 = vcmp.lt.s32.totalorder %v1587, 4
    %v1610 = vsel %vm1606, %v1590, %v1593
    %v1611 = vsel %vm1609, %v1599, 2102212464
    %v1612 = vsel %vm1608, %v1596, %v1611
    %v1613 = vsel %vm1607, %v1610, %v1612
    %v1614 = vsel %vm1606, %v1593, %v1596
    %v1615 = vsel %vm1609, %v1602, 920167782
    %v1616 = vsel %vm1608, %v1599, %v1615
    %v1617 = vsel %vm1607, %v1614, %v1616
    %v1618 = vsel %vm1606, %v1596, %v1599
    %v1619 = vsel %vm1609, %v1605, 1326507024
    %v1620 = vsel %vm1608, %v1602, %v1619
    %v1621 = vsel %vm1607, %v1618, %v1620
    %v1622 = vshll.u32 %v1582, 8
    %v1623 = vmul.u32.u64.compose %v1622, %v1621
    %v1624 = vextract.low.u32 %v1623
    %v1625 = vextract.high.u32 %v1623
    %v1626 = vmul.u32.u64.compose %v1622, %v1617
    %v1627 = vextract.low.u32 %v1626
    %v1628 = vextract.high.u32 %v1626
    %v1629 = vmul.u32 %v1622, %v1613
    %v1630 = vadd.s32 %v1625, %v1627
    %vm1631 = vc.u32 %v1625, %v1627
    %v1632 = vadd.s32 %v1628, 1
    %v1633 = vsel %vm1631, %v1632, %v1628
    %v1634 = vadd.s32 %v1629, %v1633
    %v1635 = vadd.s32 %v1634, 536870912
    %v1636 = vshrl.u32 %v1635, 30
    %v1637 = vshll.u32 %v1636, 30
    %v1638 = vsub.s32 %v1634, %v1637
    %vm1639 = vcmp.lt.s32.totalorder %v1638, 0
    %v1640 = vsub.s32 0, %v1638
    %v1641 = vsel %vm1639, %v1640, %v1638
    %v1642 = vclz %v1641
    %v1643 = vsub.s32 %v1642, 2
    %vm1644 = vcmp.gt.s32.totalorder 0, %v1643
    %v1645 = vsel %vm1644, 0, %v1643
    %v1646 = vsub.s32 32, %v1645
    %v1647 = vshll.u32 %v1638, %v1645
    %v1648 = vshrl.u32 %v1630, %v1646
    %v1649 = vor.u32 %v1647, %v1648
    %v1650 = vsub.s32 4294967266, %v1645
    %v1651 = vadd.s32 %v1650, 127
    %v1652 = vshll.u32 %v1651, 23
    %v1653 = vor.u32 4788187, %v1652
    %v1654 = vand.u32 2147483647, %v1653
    %v1656 = vcvt.s32.f32 %v1649
    %v1657 = vmul.f32 %v1656, %v1654
    %v1658 = vxor.u32 %v1657, 2147483648
    %v1659 = vsel %vm1576, %v1658, %v1657
    %v1660 = vsub.s32 4, %v1636
    %v1661 = vsel %vm1576, %v1660, %v1636
    %v1662 = vsel %vm1575, %v258, %v1659
    %v1663 = vsel %vm1575, 0, %v1661
    %v1664 = vcosq.f32.pop %v1662
    %v1665 = vsinq.f32.pop %v1662
    %vm1666 = vweird.f32 %v258
    %v1667 = vadd.s32 %v1663, 3
    %v1668 = vand.u32 %v1667, 3
    %vm1669 = vcmp.lt.s32.totalorder %v1668, 2
    %vm1670 = vcmp.eq.s32.totalorder %v1668, 0
    %v1671 = vxor.u32 %v1665, 2147483648
    %v1672 = vsel %vm1670, %v1664, %v1671
    %vm1673 = vcmp.eq.s32.totalorder %v1668, 2
    %v1674 = vxor.u32 %v1664, 2147483648
    %v1675 = vsel %vm1673, %v1674, %v1665
    %v1676 = vsel %vm1669, %v1672, %v1675
    %v1677 = vsel %vm1666, nan, %v1676
    %v1678 = vand.u32 2147483647, %v263
    %vm1679 = vcmp.le.f32.partialorder %v1678, 0.7853982
    %vm1680 = vcmp.lt.s32.totalorder %v263, 0
    %v1681 = vand.u32 %v263, 2139095040
    %v1682 = vshrl.u32 %v1681, 23
    %v1683 = vsub.s32 %v1682, 127
    %v1684 = vand.u32 2147483647, %v263
    %v1685 = vand.u32 %v1684, 8388607
    %v1686 = vor.u32 %v1685, 8388608
    %v1687 = vsub.s32 0, %v1686
    %v1688 = vadd.s32 %v1683, 1
    %vm1689 = vcmp.gt.s32.totalorder %v1688, 0
    %v1690 = vsel %vm1689, %v1688, 0
    %v1691 = vshrl.u32 %v1690, 5
    %v1692 = vand.u32 %v1690, 31
    %v1693 = vsub.s32 32, %v1692
    %v1694 = vshrl.u32 683565275, %v1693
    %v1695 = vshll.u32 683565275, %v1692
    %v1696 = vshrl.u32 2475754826, %v1693
    %v1697 = vor.u32 %v1695, %v1696
    %v1698 = vshll.u32 2475754826, %v1692
    %v1699 = vshrl.u32 2131351028, %v1693
    %v1700 = vor.u32 %v1698, %v1699
    %v1701 = vshll.u32 2131351028, %v1692
    %v1702 = vshrl.u32 2102212464, %v1693
    %v1703 = vor.u32 %v1701, %v1702
    %v1704 = vshll.u32 2102212464, %v1692
    %v1705 = vshrl.u32 920167782, %v1693
    %v1706 = vor.u32 %v1704, %v1705
    %v1707 = vshll.u32 920167782, %v1692
    %v1708 = vshrl.u32 1326507024, %v1693
    %v1709 = vor.u32 %v1707, %v1708
    %vm1710 = vcmp.lt.s32.totalorder %v1691, 1
    %vm1711 = vcmp.lt.s32.totalorder %v1691, 2
    %vm1712 = vcmp.lt.s32.totalorder %v1691, 3
    %vm1713 = vcmp.lt.s32.totalorder %v1691, 4
    %v1714 = vsel %vm1710, %v1694, %v1697
    %v1715 = vsel %vm1713, %v1703, 2102212464
    %v1716 = vsel %vm1712, %v1700, %v1715
    %v1717 = vsel %vm1711, %v1714, %v1716
    %v1718 = vsel %vm1710, %v1697, %v1700
    %v1719 = vsel %vm1713, %v1706, 920167782
    %v1720 = vsel %vm1712, %v1703, %v1719
    %v1721 = vsel %vm1711, %v1718, %v1720
    %v1722 = vsel %vm1710, %v1700, %v1703
    %v1723 = vsel %vm1713, %v1709, 1326507024
    %v1724 = vsel %vm1712, %v1706, %v1723
    %v1725 = vsel %vm1711, %v1722, %v1724
    %v1726 = vshll.u32 %v1686, 8
    %v1727 = vmul.u32.u64.compose %v1726, %v1725
    %v1728 = vextract.low.u32 %v1727
    %v1729 = vextract.high.u32 %v1727
    %v1730 = vmul.u32.u64.compose %v1726, %v1721
    %v1731 = vextract.low.u32 %v1730
    %v1732 = vextract.high.u32 %v1730
    %v1733 = vmul.u32 %v1726, %v1717
    %v1734 = vadd.s32 %v1729, %v1731
    %vm1735 = vc.u32 %v1729, %v1731
    %v1736 = vadd.s32 %v1732, 1
    %v1737 = vsel %vm1735, %v1736, %v1732
    %v1738 = vadd.s32 %v1733, %v1737
    %v1739 = vadd.s32 %v1738, 536870912
    %v1740 = vshrl.u32 %v1739, 30
    %v1741 = vshll.u32 %v1740, 30
    %v1742 = vsub.s32 %v1738, %v1741
    %vm1743 = vcmp.lt.s32.totalorder %v1742, 0
    %v1744 = vsub.s32 0, %v1742
    %v1745 = vsel %vm1743, %v1744, %v1742
    %v1746 = vclz %v1745
    %v1747 = vsub.s32 %v1746, 2
    %vm1748 = vcmp.gt.s32.totalorder 0, %v1747
    %v1749 = vsel %vm1748, 0, %v1747
    %v1750 = vsub.s32 32, %v1749
    %v1751 = vshll.u32 %v1742, %v1749
    %v1752 = vshrl.u32 %v1734, %v1750
    %v1753 = vor.u32 %v1751, %v1752
    %v1754 = vsub.s32 4294967266, %v1749
    %v1755 = vadd.s32 %v1754, 127
    %v1756 = vshll.u32 %v1755, 23
    %v1757 = vor.u32 4788187, %v1756
    %v1758 = vand.u32 2147483647, %v1757
    %v1760 = vcvt.s32.f32 %v1753
    %v1761 = vmul.f32 %v1760, %v1758
    %v1762 = vxor.u32 %v1761, 2147483648
    %v1763 = vsel %vm1680, %v1762, %v1761
    %v1764 = vsub.s32 4, %v1740
    %v1765 = vsel %vm1680, %v1764, %v1740
    %v1766 = vsel %vm1679, %v263, %v1763
    %v1767 = vsel %vm1679, 0, %v1765
    %v1768 = vcosq.f32.pop %v1766
    %v1769 = vsinq.f32.pop %v1766
    %vm1770 = vweird.f32 %v263
    %v1771 = vadd.s32 %v1767, 3
    %v1772 = vand.u32 %v1771, 3
    %vm1773 = vcmp.lt.s32.totalorder %v1772, 2
    %vm1774 = vcmp.eq.s32.totalorder %v1772, 0
    %v1775 = vxor.u32 %v1769, 2147483648
    %v1776 = vsel %vm1774, %v1768, %v1775
    %vm1777 = vcmp.eq.s32.totalorder %v1772, 2
    %v1778 = vxor.u32 %v1768, 2147483648
    %v1779 = vsel %vm1777, %v1778, %v1769
    %v1780 = vsel %vm1773, %v1776, %v1779
    %v1781 = vsel %vm1770, nan, %v1780
    %v1782 = vand.u32 2147483647, %v268
    %vm1783 = vcmp.le.f32.partialorder %v1782, 0.7853982
    %vm1784 = vcmp.lt.s32.totalorder %v268, 0
    %v1785 = vand.u32 %v268, 2139095040
    %v1786 = vshrl.u32 %v1785, 23
    %v1787 = vsub.s32 %v1786, 127
    %v1788 = vand.u32 2147483647, %v268
    %v1789 = vand.u32 %v1788, 8388607
    %v1790 = vor.u32 %v1789, 8388608
    %v1791 = vsub.s32 0, %v1790
    %v1792 = vadd.s32 %v1787, 1
    %vm1793 = vcmp.gt.s32.totalorder %v1792, 0
    %v1794 = vsel %vm1793, %v1792, 0
    %v1795 = vshrl.u32 %v1794, 5
    %v1796 = vand.u32 %v1794, 31
    %v1797 = vsub.s32 32, %v1796
    %v1798 = vshrl.u32 683565275, %v1797
    %v1799 = vshll.u32 683565275, %v1796
    %v1800 = vshrl.u32 2475754826, %v1797
    %v1801 = vor.u32 %v1799, %v1800
    %v1802 = vshll.u32 2475754826, %v1796
    %v1803 = vshrl.u32 2131351028, %v1797
    %v1804 = vor.u32 %v1802, %v1803
    %v1805 = vshll.u32 2131351028, %v1796
    %v1806 = vshrl.u32 2102212464, %v1797
    %v1807 = vor.u32 %v1805, %v1806
    %v1808 = vshll.u32 2102212464, %v1796
    %v1809 = vshrl.u32 920167782, %v1797
    %v1810 = vor.u32 %v1808, %v1809
    %v1811 = vshll.u32 920167782, %v1796
    %v1812 = vshrl.u32 1326507024, %v1797
    %v1813 = vor.u32 %v1811, %v1812
    %vm1814 = vcmp.lt.s32.totalorder %v1795, 1
    %vm1815 = vcmp.lt.s32.totalorder %v1795, 2
    %vm1816 = vcmp.lt.s32.totalorder %v1795, 3
    %vm1817 = vcmp.lt.s32.totalorder %v1795, 4
    %v1818 = vsel %vm1814, %v1798, %v1801
    %v1819 = vsel %vm1817, %v1807, 2102212464
    %v1820 = vsel %vm1816, %v1804, %v1819
    %v1821 = vsel %vm1815, %v1818, %v1820
    %v1822 = vsel %vm1814, %v1801, %v1804
    %v1823 = vsel %vm1817, %v1810, 920167782
    %v1824 = vsel %vm1816, %v1807, %v1823
    %v1825 = vsel %vm1815, %v1822, %v1824
    %v1826 = vsel %vm1814, %v1804, %v1807
    %v1827 = vsel %vm1817, %v1813, 1326507024
    %v1828 = vsel %vm1816, %v1810, %v1827
    %v1829 = vsel %vm1815, %v1826, %v1828
    %v1830 = vshll.u32 %v1790, 8
    %v1831 = vmul.u32.u64.compose %v1830, %v1829
    %v1832 = vextract.low.u32 %v1831
    %v1833 = vextract.high.u32 %v1831
    %v1834 = vmul.u32.u64.compose %v1830, %v1825
    %v1835 = vextract.low.u32 %v1834
    %v1836 = vextract.high.u32 %v1834
    %v1837 = vmul.u32 %v1830, %v1821
    %v1838 = vadd.s32 %v1833, %v1835
    %vm1839 = vc.u32 %v1833, %v1835
    %v1840 = vadd.s32 %v1836, 1
    %v1841 = vsel %vm1839, %v1840, %v1836
    %v1842 = vadd.s32 %v1837, %v1841
    %v1843 = vadd.s32 %v1842, 536870912
    %v1844 = vshrl.u32 %v1843, 30
    %v1845 = vshll.u32 %v1844, 30
    %v1846 = vsub.s32 %v1842, %v1845
    %vm1847 = vcmp.lt.s32.totalorder %v1846, 0
    %v1848 = vsub.s32 0, %v1846
    %v1849 = vsel %vm1847, %v1848, %v1846
    %v1850 = vclz %v1849
    %v1851 = vsub.s32 %v1850, 2
    %vm1852 = vcmp.gt.s32.totalorder 0, %v1851
    %v1853 = vsel %vm1852, 0, %v1851
    %v1854 = vsub.s32 32, %v1853
    %v1855 = vshll.u32 %v1846, %v1853
    %v1856 = vshrl.u32 %v1838, %v1854
    %v1857 = vor.u32 %v1855, %v1856
    %v1858 = vsub.s32 4294967266, %v1853
    %v1859 = vadd.s32 %v1858, 127
    %v1860 = vshll.u32 %v1859, 23
    %v1861 = vor.u32 4788187, %v1860
    %v1862 = vand.u32 2147483647, %v1861
    %v1864 = vcvt.s32.f32 %v1857
    %v1865 = vmul.f32 %v1864, %v1862
    %v1866 = vxor.u32 %v1865, 2147483648
    %v1867 = vsel %vm1784, %v1866, %v1865
    %v1868 = vsub.s32 4, %v1844
    %v1869 = vsel %vm1784, %v1868, %v1844
    %v1870 = vsel %vm1783, %v268, %v1867
    %v1871 = vsel %vm1783, 0, %v1869
    %v1872 = vcosq.f32.pop %v1870
    %v1873 = vsinq.f32.pop %v1870
    %vm1874 = vweird.f32 %v268
    %v1875 = vadd.s32 %v1871, 3
    %v1876 = vand.u32 %v1875, 3
    %vm1877 = vcmp.lt.s32.totalorder %v1876, 2
    %vm1878 = vcmp.eq.s32.totalorder %v1876, 0
    %v1879 = vxor.u32 %v1873, 2147483648
    %v1880 = vsel %vm1878, %v1872, %v1879
    %vm1881 = vcmp.eq.s32.totalorder %v1876, 2
    %v1882 = vxor.u32 %v1872, 2147483648
    %v1883 = vsel %vm1881, %v1882, %v1873
    %v1884 = vsel %vm1877, %v1880, %v1883
    %v1885 = vsel %vm1874, nan, %v1884
    %v1886 = vand.u32 2147483647, %v273
    %vm1887 = vcmp.le.f32.partialorder %v1886, 0.7853982
    %vm1888 = vcmp.lt.s32.totalorder %v273, 0
    %v1889 = vand.u32 %v273, 2139095040
    %v1890 = vshrl.u32 %v1889, 23
    %v1891 = vsub.s32 %v1890, 127
    %v1892 = vand.u32 2147483647, %v273
    %v1893 = vand.u32 %v1892, 8388607
    %v1894 = vor.u32 %v1893, 8388608
    %v1895 = vsub.s32 0, %v1894
    %v1896 = vadd.s32 %v1891, 1
    %vm1897 = vcmp.gt.s32.totalorder %v1896, 0
    %v1898 = vsel %vm1897, %v1896, 0
    %v1899 = vshrl.u32 %v1898, 5
    %v1900 = vand.u32 %v1898, 31
    %v1901 = vsub.s32 32, %v1900
    %v1902 = vshrl.u32 683565275, %v1901
    %v1903 = vshll.u32 683565275, %v1900
    %v1904 = vshrl.u32 2475754826, %v1901
    %v1905 = vor.u32 %v1903, %v1904
    %v1906 = vshll.u32 2475754826, %v1900
    %v1907 = vshrl.u32 2131351028, %v1901
    %v1908 = vor.u32 %v1906, %v1907
    %v1909 = vshll.u32 2131351028, %v1900
    %v1910 = vshrl.u32 2102212464, %v1901
    %v1911 = vor.u32 %v1909, %v1910
    %v1912 = vshll.u32 2102212464, %v1900
    %v1913 = vshrl.u32 920167782, %v1901
    %v1914 = vor.u32 %v1912, %v1913
    %v1915 = vshll.u32 920167782, %v1900
    %v1916 = vshrl.u32 1326507024, %v1901
    %v1917 = vor.u32 %v1915, %v1916
    %vm1918 = vcmp.lt.s32.totalorder %v1899, 1
    %vm1919 = vcmp.lt.s32.totalorder %v1899, 2
    %vm1920 = vcmp.lt.s32.totalorder %v1899, 3
    %vm1921 = vcmp.lt.s32.totalorder %v1899, 4
    %v1922 = vsel %vm1918, %v1902, %v1905
    %v1923 = vsel %vm1921, %v1911, 2102212464
    %v1924 = vsel %vm1920, %v1908, %v1923
    %v1925 = vsel %vm1919, %v1922, %v1924
    %v1926 = vsel %vm1918, %v1905, %v1908
    %v1927 = vsel %vm1921, %v1914, 920167782
    %v1928 = vsel %vm1920, %v1911, %v1927
    %v1929 = vsel %vm1919, %v1926, %v1928
    %v1930 = vsel %vm1918, %v1908, %v1911
    %v1931 = vsel %vm1921, %v1917, 1326507024
    %v1932 = vsel %vm1920, %v1914, %v1931
    %v1933 = vsel %vm1919, %v1930, %v1932
    %v1934 = vshll.u32 %v1894, 8
    %v1935 = vmul.u32.u64.compose %v1934, %v1933
    %v1936 = vextract.low.u32 %v1935
    %v1937 = vextract.high.u32 %v1935
    %v1938 = vmul.u32.u64.compose %v1934, %v1929
    %v1939 = vextract.low.u32 %v1938
    %v1940 = vextract.high.u32 %v1938
    %v1941 = vmul.u32 %v1934, %v1925
    %v1942 = vadd.s32 %v1937, %v1939
    %vm1943 = vc.u32 %v1937, %v1939
    %v1944 = vadd.s32 %v1940, 1
    %v1945 = vsel %vm1943, %v1944, %v1940
    %v1946 = vadd.s32 %v1941, %v1945
    %v1947 = vadd.s32 %v1946, 536870912
    %v1948 = vshrl.u32 %v1947, 30
    %v1949 = vshll.u32 %v1948, 30
    %v1950 = vsub.s32 %v1946, %v1949
    %vm1951 = vcmp.lt.s32.totalorder %v1950, 0
    %v1952 = vsub.s32 0, %v1950
    %v1953 = vsel %vm1951, %v1952, %v1950
    %v1954 = vclz %v1953
    %v1955 = vsub.s32 %v1954, 2
    %vm1956 = vcmp.gt.s32.totalorder 0, %v1955
    %v1957 = vsel %vm1956, 0, %v1955
    %v1958 = vsub.s32 32, %v1957
    %v1959 = vshll.u32 %v1950, %v1957
    %v1960 = vshrl.u32 %v1942, %v1958
    %v1961 = vor.u32 %v1959, %v1960
    %v1962 = vsub.s32 4294967266, %v1957
    %v1963 = vadd.s32 %v1962, 127
    %v1964 = vshll.u32 %v1963, 23
    %v1965 = vor.u32 4788187, %v1964
    %v1966 = vand.u32 2147483647, %v1965
    %v1968 = vcvt.s32.f32 %v1961
    %v1969 = vmul.f32 %v1968, %v1966
    %v1970 = vxor.u32 %v1969, 2147483648
    %v1971 = vsel %vm1888, %v1970, %v1969
    %v1972 = vsub.s32 4, %v1948
    %v1973 = vsel %vm1888, %v1972, %v1948
    %v1974 = vsel %vm1887, %v273, %v1971
    %v1975 = vsel %vm1887, 0, %v1973
    %v1976 = vcosq.f32.pop %v1974
    %v1977 = vsinq.f32.pop %v1974
    %vm1978 = vweird.f32 %v273
    %v1979 = vadd.s32 %v1975, 3
    %v1980 = vand.u32 %v1979, 3
    %vm1981 = vcmp.lt.s32.totalorder %v1980, 2
    %vm1982 = vcmp.eq.s32.totalorder %v1980, 0
    %v1983 = vxor.u32 %v1977, 2147483648
    %v1984 = vsel %vm1982, %v1976, %v1983
    %vm1985 = vcmp.eq.s32.totalorder %v1980, 2
    %v1986 = vxor.u32 %v1976, 2147483648
    %v1987 = vsel %vm1985, %v1986, %v1977
    %v1988 = vsel %vm1981, %v1984, %v1987
    %v1989 = vsel %vm1978, nan, %v1988
    %v1990 = vand.u32 2147483647, %v278
    %vm1991 = vcmp.le.f32.partialorder %v1990, 0.7853982
    %vm1992 = vcmp.lt.s32.totalorder %v278, 0
    %v1993 = vand.u32 %v278, 2139095040
    %v1994 = vshrl.u32 %v1993, 23
    %v1995 = vsub.s32 %v1994, 127
    %v1996 = vand.u32 2147483647, %v278
    %v1997 = vand.u32 %v1996, 8388607
    %v1998 = vor.u32 %v1997, 8388608
    %v1999 = vsub.s32 0, %v1998
    %v2000 = vadd.s32 %v1995, 1
    %vm2001 = vcmp.gt.s32.totalorder %v2000, 0
    %v2002 = vsel %vm2001, %v2000, 0
    %v2003 = vshrl.u32 %v2002, 5
    %v2004 = vand.u32 %v2002, 31
    %v2005 = vsub.s32 32, %v2004
    %v2006 = vshrl.u32 683565275, %v2005
    %v2007 = vshll.u32 683565275, %v2004
    %v2008 = vshrl.u32 2475754826, %v2005
    %v2009 = vor.u32 %v2007, %v2008
    %v2010 = vshll.u32 2475754826, %v2004
    %v2011 = vshrl.u32 2131351028, %v2005
    %v2012 = vor.u32 %v2010, %v2011
    %v2013 = vshll.u32 2131351028, %v2004
    %v2014 = vshrl.u32 2102212464, %v2005
    %v2015 = vor.u32 %v2013, %v2014
    %v2016 = vshll.u32 2102212464, %v2004
    %v2017 = vshrl.u32 920167782, %v2005
    %v2018 = vor.u32 %v2016, %v2017
    %v2019 = vshll.u32 920167782, %v2004
    %v2020 = vshrl.u32 1326507024, %v2005
    %v2021 = vor.u32 %v2019, %v2020
    %vm2022 = vcmp.lt.s32.totalorder %v2003, 1
    %vm2023 = vcmp.lt.s32.totalorder %v2003, 2
    %vm2024 = vcmp.lt.s32.totalorder %v2003, 3
    %vm2025 = vcmp.lt.s32.totalorder %v2003, 4
    %v2026 = vsel %vm2022, %v2006, %v2009
    %v2027 = vsel %vm2025, %v2015, 2102212464
    %v2028 = vsel %vm2024, %v2012, %v2027
    %v2029 = vsel %vm2023, %v2026, %v2028
    %v2030 = vsel %vm2022, %v2009, %v2012
    %v2031 = vsel %vm2025, %v2018, 920167782
    %v2032 = vsel %vm2024, %v2015, %v2031
    %v2033 = vsel %vm2023, %v2030, %v2032
    %v2034 = vsel %vm2022, %v2012, %v2015
    %v2035 = vsel %vm2025, %v2021, 1326507024
    %v2036 = vsel %vm2024, %v2018, %v2035
    %v2037 = vsel %vm2023, %v2034, %v2036
    %v2038 = vshll.u32 %v1998, 8
    %v2039 = vmul.u32.u64.compose %v2038, %v2037
    %v2040 = vextract.low.u32 %v2039
    %v2041 = vextract.high.u32 %v2039
    %v2042 = vmul.u32.u64.compose %v2038, %v2033
    %v2043 = vextract.low.u32 %v2042
    %v2044 = vextract.high.u32 %v2042
    %v2045 = vmul.u32 %v2038, %v2029
    %v2046 = vadd.s32 %v2041, %v2043
    %vm2047 = vc.u32 %v2041, %v2043
    %v2048 = vadd.s32 %v2044, 1
    %v2049 = vsel %vm2047, %v2048, %v2044
    %v2050 = vadd.s32 %v2045, %v2049
    %v2051 = vadd.s32 %v2050, 536870912
    %v2052 = vshrl.u32 %v2051, 30
    %v2053 = vshll.u32 %v2052, 30
    %v2054 = vsub.s32 %v2050, %v2053
    %vm2055 = vcmp.lt.s32.totalorder %v2054, 0
    %v2056 = vsub.s32 0, %v2054
    %v2057 = vsel %vm2055, %v2056, %v2054
    %v2058 = vclz %v2057
    %v2059 = vsub.s32 %v2058, 2
    %vm2060 = vcmp.gt.s32.totalorder 0, %v2059
    %v2061 = vsel %vm2060, 0, %v2059
    %v2062 = vsub.s32 32, %v2061
    %v2063 = vshll.u32 %v2054, %v2061
    %v2064 = vshrl.u32 %v2046, %v2062
    %v2065 = vor.u32 %v2063, %v2064
    %v2066 = vsub.s32 4294967266, %v2061
    %v2067 = vadd.s32 %v2066, 127
    %v2068 = vshll.u32 %v2067, 23
    %v2069 = vor.u32 4788187, %v2068
    %v2070 = vand.u32 2147483647, %v2069
    %v2072 = vcvt.s32.f32 %v2065
    %v2073 = vmul.f32 %v2072, %v2070
    %v2074 = vxor.u32 %v2073, 2147483648
    %v2075 = vsel %vm1992, %v2074, %v2073
    %v2076 = vsub.s32 4, %v2052
    %v2077 = vsel %vm1992, %v2076, %v2052
    %v2078 = vsel %vm1991, %v278, %v2075
    %v2079 = vsel %vm1991, 0, %v2077
    %v2080 = vcosq.f32.pop %v2078
    %v2081 = vsinq.f32.pop %v2078
    %vm2082 = vweird.f32 %v278
    %v2083 = vadd.s32 %v2079, 3
    %v2084 = vand.u32 %v2083, 3
    %vm2085 = vcmp.lt.s32.totalorder %v2084, 2
    %vm2086 = vcmp.eq.s32.totalorder %v2084, 0
    %v2087 = vxor.u32 %v2081, 2147483648
    %v2088 = vsel %vm2086, %v2080, %v2087
    %vm2089 = vcmp.eq.s32.totalorder %v2084, 2
    %v2090 = vxor.u32 %v2080, 2147483648
    %v2091 = vsel %vm2089, %v2090, %v2081
    %v2092 = vsel %vm2085, %v2088, %v2091
    %v2093 = vsel %vm2082, nan, %v2092
    %v2094 = vand.u32 2147483647, %v283
    %vm2095 = vcmp.le.f32.partialorder %v2094, 0.7853982
    %vm2096 = vcmp.lt.s32.totalorder %v283, 0
    %v2097 = vand.u32 %v283, 2139095040
    %v2098 = vshrl.u32 %v2097, 23
    %v2099 = vsub.s32 %v2098, 127
    %v2100 = vand.u32 2147483647, %v283
    %v2101 = vand.u32 %v2100, 8388607
    %v2102 = vor.u32 %v2101, 8388608
    %v2103 = vsub.s32 0, %v2102
    %v2104 = vadd.s32 %v2099, 1
    %vm2105 = vcmp.gt.s32.totalorder %v2104, 0
    %v2106 = vsel %vm2105, %v2104, 0
    %v2107 = vshrl.u32 %v2106, 5
    %v2108 = vand.u32 %v2106, 31
    %v2109 = vsub.s32 32, %v2108
    %v2110 = vshrl.u32 683565275, %v2109
    %v2111 = vshll.u32 683565275, %v2108
    %v2112 = vshrl.u32 2475754826, %v2109
    %v2113 = vor.u32 %v2111, %v2112
    %v2114 = vshll.u32 2475754826, %v2108
    %v2115 = vshrl.u32 2131351028, %v2109
    %v2116 = vor.u32 %v2114, %v2115
    %v2117 = vshll.u32 2131351028, %v2108
    %v2118 = vshrl.u32 2102212464, %v2109
    %v2119 = vor.u32 %v2117, %v2118
    %v2120 = vshll.u32 2102212464, %v2108
    %v2121 = vshrl.u32 920167782, %v2109
    %v2122 = vor.u32 %v2120, %v2121
    %v2123 = vshll.u32 920167782, %v2108
    %v2124 = vshrl.u32 1326507024, %v2109
    %v2125 = vor.u32 %v2123, %v2124
    %vm2126 = vcmp.lt.s32.totalorder %v2107, 1
    %vm2127 = vcmp.lt.s32.totalorder %v2107, 2
    %vm2128 = vcmp.lt.s32.totalorder %v2107, 3
    %vm2129 = vcmp.lt.s32.totalorder %v2107, 4
    %v2130 = vsel %vm2126, %v2110, %v2113
    %v2131 = vsel %vm2129, %v2119, 2102212464
    %v2132 = vsel %vm2128, %v2116, %v2131
    %v2133 = vsel %vm2127, %v2130, %v2132
    %v2134 = vsel %vm2126, %v2113, %v2116
    %v2135 = vsel %vm2129, %v2122, 920167782
    %v2136 = vsel %vm2128, %v2119, %v2135
    %v2137 = vsel %vm2127, %v2134, %v2136
    %v2138 = vsel %vm2126, %v2116, %v2119
    %v2139 = vsel %vm2129, %v2125, 1326507024
    %v2140 = vsel %vm2128, %v2122, %v2139
    %v2141 = vsel %vm2127, %v2138, %v2140
    %v2142 = vshll.u32 %v2102, 8
    %v2143 = vmul.u32.u64.compose %v2142, %v2141
    %v2144 = vextract.low.u32 %v2143
    %v2145 = vextract.high.u32 %v2143
    %v2146 = vmul.u32.u64.compose %v2142, %v2137
    %v2147 = vextract.low.u32 %v2146
    %v2148 = vextract.high.u32 %v2146
    %v2149 = vmul.u32 %v2142, %v2133
    %v2150 = vadd.s32 %v2145, %v2147
    %vm2151 = vc.u32 %v2145, %v2147
    %v2152 = vadd.s32 %v2148, 1
    %v2153 = vsel %vm2151, %v2152, %v2148
    %v2154 = vadd.s32 %v2149, %v2153
    %v2155 = vadd.s32 %v2154, 536870912
    %v2156 = vshrl.u32 %v2155, 30
    %v2157 = vshll.u32 %v2156, 30
    %v2158 = vsub.s32 %v2154, %v2157
    %vm2159 = vcmp.lt.s32.totalorder %v2158, 0
    %v2160 = vsub.s32 0, %v2158
    %v2161 = vsel %vm2159, %v2160, %v2158
    %v2162 = vclz %v2161
    %v2163 = vsub.s32 %v2162, 2
    %vm2164 = vcmp.gt.s32.totalorder 0, %v2163
    %v2165 = vsel %vm2164, 0, %v2163
    %v2166 = vsub.s32 32, %v2165
    %v2167 = vshll.u32 %v2158, %v2165
    %v2168 = vshrl.u32 %v2150, %v2166
    %v2169 = vor.u32 %v2167, %v2168
    %v2170 = vsub.s32 4294967266, %v2165
    %v2171 = vadd.s32 %v2170, 127
    %v2172 = vshll.u32 %v2171, 23
    %v2173 = vor.u32 4788187, %v2172
    %v2174 = vand.u32 2147483647, %v2173
    %v2176 = vcvt.s32.f32 %v2169
    %v2177 = vmul.f32 %v2176, %v2174
    %v2178 = vxor.u32 %v2177, 2147483648
    %v2179 = vsel %vm2096, %v2178, %v2177
    %v2180 = vsub.s32 4, %v2156
    %v2181 = vsel %vm2096, %v2180, %v2156
    %v2182 = vsel %vm2095, %v283, %v2179
    %v2183 = vsel %vm2095, 0, %v2181
    %v2184 = vcosq.f32.pop %v2182
    %v2185 = vsinq.f32.pop %v2182
    %vm2186 = vweird.f32 %v283
    %v2187 = vadd.s32 %v2183, 3
    %v2188 = vand.u32 %v2187, 3
    %vm2189 = vcmp.lt.s32.totalorder %v2188, 2
    %vm2190 = vcmp.eq.s32.totalorder %v2188, 0
    %v2191 = vxor.u32 %v2185, 2147483648
    %v2192 = vsel %vm2190, %v2184, %v2191
    %vm2193 = vcmp.eq.s32.totalorder %v2188, 2
    %v2194 = vxor.u32 %v2184, 2147483648
    %v2195 = vsel %vm2193, %v2194, %v2185
    %v2196 = vsel %vm2189, %v2192, %v2195
    %v2197 = vsel %vm2186, nan, %v2196
    %v2198 = vand.u32 2147483647, %v288
    %vm2199 = vcmp.le.f32.partialorder %v2198, 0.7853982
    %vm2200 = vcmp.lt.s32.totalorder %v288, 0
    %v2201 = vand.u32 %v288, 2139095040
    %v2202 = vshrl.u32 %v2201, 23
    %v2203 = vsub.s32 %v2202, 127
    %v2204 = vand.u32 2147483647, %v288
    %v2205 = vand.u32 %v2204, 8388607
    %v2206 = vor.u32 %v2205, 8388608
    %v2207 = vsub.s32 0, %v2206
    %v2208 = vadd.s32 %v2203, 1
    %vm2209 = vcmp.gt.s32.totalorder %v2208, 0
    %v2210 = vsel %vm2209, %v2208, 0
    %v2211 = vshrl.u32 %v2210, 5
    %v2212 = vand.u32 %v2210, 31
    %v2213 = vsub.s32 32, %v2212
    %v2214 = vshrl.u32 683565275, %v2213
    %v2215 = vshll.u32 683565275, %v2212
    %v2216 = vshrl.u32 2475754826, %v2213
    %v2217 = vor.u32 %v2215, %v2216
    %v2218 = vshll.u32 2475754826, %v2212
    %v2219 = vshrl.u32 2131351028, %v2213
    %v2220 = vor.u32 %v2218, %v2219
    %v2221 = vshll.u32 2131351028, %v2212
    %v2222 = vshrl.u32 2102212464, %v2213
    %v2223 = vor.u32 %v2221, %v2222
    %v2224 = vshll.u32 2102212464, %v2212
    %v2225 = vshrl.u32 920167782, %v2213
    %v2226 = vor.u32 %v2224, %v2225
    %v2227 = vshll.u32 920167782, %v2212
    %v2228 = vshrl.u32 1326507024, %v2213
    %v2229 = vor.u32 %v2227, %v2228
    %vm2230 = vcmp.lt.s32.totalorder %v2211, 1
    %vm2231 = vcmp.lt.s32.totalorder %v2211, 2
    %vm2232 = vcmp.lt.s32.totalorder %v2211, 3
    %vm2233 = vcmp.lt.s32.totalorder %v2211, 4
    %v2234 = vsel %vm2230, %v2214, %v2217
    %v2235 = vsel %vm2233, %v2223, 2102212464
    %v2236 = vsel %vm2232, %v2220, %v2235
    %v2237 = vsel %vm2231, %v2234, %v2236
    %v2238 = vsel %vm2230, %v2217, %v2220
    %v2239 = vsel %vm2233, %v2226, 920167782
    %v2240 = vsel %vm2232, %v2223, %v2239
    %v2241 = vsel %vm2231, %v2238, %v2240
    %v2242 = vsel %vm2230, %v2220, %v2223
    %v2243 = vsel %vm2233, %v2229, 1326507024
    %v2244 = vsel %vm2232, %v2226, %v2243
    %v2245 = vsel %vm2231, %v2242, %v2244
    %v2246 = vshll.u32 %v2206, 8
    %v2247 = vmul.u32.u64.compose %v2246, %v2245
    %v2248 = vextract.low.u32 %v2247
    %v2249 = vextract.high.u32 %v2247
    %v2250 = vmul.u32.u64.compose %v2246, %v2241
    %v2251 = vextract.low.u32 %v2250
    %v2252 = vextract.high.u32 %v2250
    %v2253 = vmul.u32 %v2246, %v2237
    %v2254 = vadd.s32 %v2249, %v2251
    %vm2255 = vc.u32 %v2249, %v2251
    %v2256 = vadd.s32 %v2252, 1
    %v2257 = vsel %vm2255, %v2256, %v2252
    %v2258 = vadd.s32 %v2253, %v2257
    %v2259 = vadd.s32 %v2258, 536870912
    %v2260 = vshrl.u32 %v2259, 30
    %v2261 = vshll.u32 %v2260, 30
    %v2262 = vsub.s32 %v2258, %v2261
    %vm2263 = vcmp.lt.s32.totalorder %v2262, 0
    %v2264 = vsub.s32 0, %v2262
    %v2265 = vsel %vm2263, %v2264, %v2262
    %v2266 = vclz %v2265
    %v2267 = vsub.s32 %v2266, 2
    %vm2268 = vcmp.gt.s32.totalorder 0, %v2267
    %v2269 = vsel %vm2268, 0, %v2267
    %v2270 = vsub.s32 32, %v2269
    %v2271 = vshll.u32 %v2262, %v2269
    %v2272 = vshrl.u32 %v2254, %v2270
    %v2273 = vor.u32 %v2271, %v2272
    %v2274 = vsub.s32 4294967266, %v2269
    %v2275 = vadd.s32 %v2274, 127
    %v2276 = vshll.u32 %v2275, 23
    %v2277 = vor.u32 4788187, %v2276
    %v2278 = vand.u32 2147483647, %v2277
    %v2280 = vcvt.s32.f32 %v2273
    %v2281 = vmul.f32 %v2280, %v2278
    %v2282 = vxor.u32 %v2281, 2147483648
    %v2283 = vsel %vm2200, %v2282, %v2281
    %v2284 = vsub.s32 4, %v2260
    %v2285 = vsel %vm2200, %v2284, %v2260
    %v2286 = vsel %vm2199, %v288, %v2283
    %v2287 = vsel %vm2199, 0, %v2285
    %v2288 = vcosq.f32.pop %v2286
    %v2289 = vsinq.f32.pop %v2286
    %vm2290 = vweird.f32 %v288
    %v2291 = vadd.s32 %v2287, 3
    %v2292 = vand.u32 %v2291, 3
    %vm2293 = vcmp.lt.s32.totalorder %v2292, 2
    %vm2294 = vcmp.eq.s32.totalorder %v2292, 0
    %v2295 = vxor.u32 %v2289, 2147483648
    %v2296 = vsel %vm2294, %v2288, %v2295
    %vm2297 = vcmp.eq.s32.totalorder %v2292, 2
    %v2298 = vxor.u32 %v2288, 2147483648
    %v2299 = vsel %vm2297, %v2298, %v2289
    %v2300 = vsel %vm2293, %v2296, %v2299
    %v2301 = vsel %vm2290, nan, %v2300
    %v2302 = vand.u32 2147483647, %v293
    %vm2303 = vcmp.le.f32.partialorder %v2302, 0.7853982
    %vm2304 = vcmp.lt.s32.totalorder %v293, 0
    %v2305 = vand.u32 %v293, 2139095040
    %v2306 = vshrl.u32 %v2305, 23
    %v2307 = vsub.s32 %v2306, 127
    %v2308 = vand.u32 2147483647, %v293
    %v2309 = vand.u32 %v2308, 8388607
    %v2310 = vor.u32 %v2309, 8388608
    %v2311 = vsub.s32 0, %v2310
    %v2312 = vadd.s32 %v2307, 1
    %vm2313 = vcmp.gt.s32.totalorder %v2312, 0
    %v2314 = vsel %vm2313, %v2312, 0
    %v2315 = vshrl.u32 %v2314, 5
    %v2316 = vand.u32 %v2314, 31
    %v2317 = vsub.s32 32, %v2316
    %v2318 = vshrl.u32 683565275, %v2317
    %v2319 = vshll.u32 683565275, %v2316
    %v2320 = vshrl.u32 2475754826, %v2317
    %v2321 = vor.u32 %v2319, %v2320
    %v2322 = vshll.u32 2475754826, %v2316
    %v2323 = vshrl.u32 2131351028, %v2317
    %v2324 = vor.u32 %v2322, %v2323
    %v2325 = vshll.u32 2131351028, %v2316
    %v2326 = vshrl.u32 2102212464, %v2317
    %v2327 = vor.u32 %v2325, %v2326
    %v2328 = vshll.u32 2102212464, %v2316
    %v2329 = vshrl.u32 920167782, %v2317
    %v2330 = vor.u32 %v2328, %v2329
    %v2331 = vshll.u32 920167782, %v2316
    %v2332 = vshrl.u32 1326507024, %v2317
    %v2333 = vor.u32 %v2331, %v2332
    %vm2334 = vcmp.lt.s32.totalorder %v2315, 1
    %vm2335 = vcmp.lt.s32.totalorder %v2315, 2
    %vm2336 = vcmp.lt.s32.totalorder %v2315, 3
    %vm2337 = vcmp.lt.s32.totalorder %v2315, 4
    %v2338 = vsel %vm2334, %v2318, %v2321
    %v2339 = vsel %vm2337, %v2327, 2102212464
    %v2340 = vsel %vm2336, %v2324, %v2339
    %v2341 = vsel %vm2335, %v2338, %v2340
    %v2342 = vsel %vm2334, %v2321, %v2324
    %v2343 = vsel %vm2337, %v2330, 920167782
    %v2344 = vsel %vm2336, %v2327, %v2343
    %v2345 = vsel %vm2335, %v2342, %v2344
    %v2346 = vsel %vm2334, %v2324, %v2327
    %v2347 = vsel %vm2337, %v2333, 1326507024
    %v2348 = vsel %vm2336, %v2330, %v2347
    %v2349 = vsel %vm2335, %v2346, %v2348
    %v2350 = vshll.u32 %v2310, 8
    %v2351 = vmul.u32.u64.compose %v2350, %v2349
    %v2352 = vextract.low.u32 %v2351
    %v2353 = vextract.high.u32 %v2351
    %v2354 = vmul.u32.u64.compose %v2350, %v2345
    %v2355 = vextract.low.u32 %v2354
    %v2356 = vextract.high.u32 %v2354
    %v2357 = vmul.u32 %v2350, %v2341
    %v2358 = vadd.s32 %v2353, %v2355
    %vm2359 = vc.u32 %v2353, %v2355
    %v2360 = vadd.s32 %v2356, 1
    %v2361 = vsel %vm2359, %v2360, %v2356
    %v2362 = vadd.s32 %v2357, %v2361
    %v2363 = vadd.s32 %v2362, 536870912
    %v2364 = vshrl.u32 %v2363, 30
    %v2365 = vshll.u32 %v2364, 30
    %v2366 = vsub.s32 %v2362, %v2365
    %vm2367 = vcmp.lt.s32.totalorder %v2366, 0
    %v2368 = vsub.s32 0, %v2366
    %v2369 = vsel %vm2367, %v2368, %v2366
    %v2370 = vclz %v2369
    %v2371 = vsub.s32 %v2370, 2
    %vm2372 = vcmp.gt.s32.totalorder 0, %v2371
    %v2373 = vsel %vm2372, 0, %v2371
    %v2374 = vsub.s32 32, %v2373
    %v2375 = vshll.u32 %v2366, %v2373
    %v2376 = vshrl.u32 %v2358, %v2374
    %v2377 = vor.u32 %v2375, %v2376
    %v2378 = vsub.s32 4294967266, %v2373
    %v2379 = vadd.s32 %v2378, 127
    %v2380 = vshll.u32 %v2379, 23
    %v2381 = vor.u32 4788187, %v2380
    %v2382 = vand.u32 2147483647, %v2381
    %v2384 = vcvt.s32.f32 %v2377
    %v2385 = vmul.f32 %v2384, %v2382
    %v2386 = vxor.u32 %v2385, 2147483648
    %v2387 = vsel %vm2304, %v2386, %v2385
    %v2388 = vsub.s32 4, %v2364
    %v2389 = vsel %vm2304, %v2388, %v2364
    %v2390 = vsel %vm2303, %v293, %v2387
    %v2391 = vsel %vm2303, 0, %v2389
    %v2392 = vcosq.f32.pop %v2390
    %v2393 = vsinq.f32.pop %v2390
    %vm2394 = vweird.f32 %v293
    %v2395 = vadd.s32 %v2391, 3
    %v2396 = vand.u32 %v2395, 3
    %vm2397 = vcmp.lt.s32.totalorder %v2396, 2
    %vm2398 = vcmp.eq.s32.totalorder %v2396, 0
    %v2399 = vxor.u32 %v2393, 2147483648
    %v2400 = vsel %vm2398, %v2392, %v2399
    %vm2401 = vcmp.eq.s32.totalorder %v2396, 2
    %v2402 = vxor.u32 %v2392, 2147483648
    %v2403 = vsel %vm2401, %v2402, %v2393
    %v2404 = vsel %vm2397, %v2400, %v2403
    %v2405 = vsel %vm2394, nan, %v2404
    %v2406 = vand.u32 2147483647, %v298
    %vm2407 = vcmp.le.f32.partialorder %v2406, 0.7853982
    %vm2408 = vcmp.lt.s32.totalorder %v298, 0
    %v2409 = vand.u32 %v298, 2139095040
    %v2410 = vshrl.u32 %v2409, 23
    %v2411 = vsub.s32 %v2410, 127
    %v2412 = vand.u32 2147483647, %v298
    %v2413 = vand.u32 %v2412, 8388607
    %v2414 = vor.u32 %v2413, 8388608
    %v2415 = vsub.s32 0, %v2414
    %v2416 = vadd.s32 %v2411, 1
    %vm2417 = vcmp.gt.s32.totalorder %v2416, 0
    %v2418 = vsel %vm2417, %v2416, 0
    %v2419 = vshrl.u32 %v2418, 5
    %v2420 = vand.u32 %v2418, 31
    %v2421 = vsub.s32 32, %v2420
    %v2422 = vshrl.u32 683565275, %v2421
    %v2423 = vshll.u32 683565275, %v2420
    %v2424 = vshrl.u32 2475754826, %v2421
    %v2425 = vor.u32 %v2423, %v2424
    %v2426 = vshll.u32 2475754826, %v2420
    %v2427 = vshrl.u32 2131351028, %v2421
    %v2428 = vor.u32 %v2426, %v2427
    %v2429 = vshll.u32 2131351028, %v2420
    %v2430 = vshrl.u32 2102212464, %v2421
    %v2431 = vor.u32 %v2429, %v2430
    %v2432 = vshll.u32 2102212464, %v2420
    %v2433 = vshrl.u32 920167782, %v2421
    %v2434 = vor.u32 %v2432, %v2433
    %v2435 = vshll.u32 920167782, %v2420
    %v2436 = vshrl.u32 1326507024, %v2421
    %v2437 = vor.u32 %v2435, %v2436
    %vm2438 = vcmp.lt.s32.totalorder %v2419, 1
    %vm2439 = vcmp.lt.s32.totalorder %v2419, 2
    %vm2440 = vcmp.lt.s32.totalorder %v2419, 3
    %vm2441 = vcmp.lt.s32.totalorder %v2419, 4
    %v2442 = vsel %vm2438, %v2422, %v2425
    %v2443 = vsel %vm2441, %v2431, 2102212464
    %v2444 = vsel %vm2440, %v2428, %v2443
    %v2445 = vsel %vm2439, %v2442, %v2444
    %v2446 = vsel %vm2438, %v2425, %v2428
    %v2447 = vsel %vm2441, %v2434, 920167782
    %v2448 = vsel %vm2440, %v2431, %v2447
    %v2449 = vsel %vm2439, %v2446, %v2448
    %v2450 = vsel %vm2438, %v2428, %v2431
    %v2451 = vsel %vm2441, %v2437, 1326507024
    %v2452 = vsel %vm2440, %v2434, %v2451
    %v2453 = vsel %vm2439, %v2450, %v2452
    %v2454 = vshll.u32 %v2414, 8
    %v2455 = vmul.u32.u64.compose %v2454, %v2453
    %v2456 = vextract.low.u32 %v2455
    %v2457 = vextract.high.u32 %v2455
    %v2458 = vmul.u32.u64.compose %v2454, %v2449
    %v2459 = vextract.low.u32 %v2458
    %v2460 = vextract.high.u32 %v2458
    %v2461 = vmul.u32 %v2454, %v2445
    %v2462 = vadd.s32 %v2457, %v2459
    %vm2463 = vc.u32 %v2457, %v2459
    %v2464 = vadd.s32 %v2460, 1
    %v2465 = vsel %vm2463, %v2464, %v2460
    %v2466 = vadd.s32 %v2461, %v2465
    %v2467 = vadd.s32 %v2466, 536870912
    %v2468 = vshrl.u32 %v2467, 30
    %v2469 = vshll.u32 %v2468, 30
    %v2470 = vsub.s32 %v2466, %v2469
    %vm2471 = vcmp.lt.s32.totalorder %v2470, 0
    %v2472 = vsub.s32 0, %v2470
    %v2473 = vsel %vm2471, %v2472, %v2470
    %v2474 = vclz %v2473
    %v2475 = vsub.s32 %v2474, 2
    %vm2476 = vcmp.gt.s32.totalorder 0, %v2475
    %v2477 = vsel %vm2476, 0, %v2475
    %v2478 = vsub.s32 32, %v2477
    %v2479 = vshll.u32 %v2470, %v2477
    %v2480 = vshrl.u32 %v2462, %v2478
    %v2481 = vor.u32 %v2479, %v2480
    %v2482 = vsub.s32 4294967266, %v2477
    %v2483 = vadd.s32 %v2482, 127
    %v2484 = vshll.u32 %v2483, 23
    %v2485 = vor.u32 4788187, %v2484
    %v2486 = vand.u32 2147483647, %v2485
    %v2488 = vcvt.s32.f32 %v2481
    %v2489 = vmul.f32 %v2488, %v2486
    %v2490 = vxor.u32 %v2489, 2147483648
    %v2491 = vsel %vm2408, %v2490, %v2489
    %v2492 = vsub.s32 4, %v2468
    %v2493 = vsel %vm2408, %v2492, %v2468
    %v2494 = vsel %vm2407, %v298, %v2491
    %v2495 = vsel %vm2407, 0, %v2493
    %v2496 = vcosq.f32.pop %v2494
    %v2497 = vsinq.f32.pop %v2494
    %vm2498 = vweird.f32 %v298
    %v2499 = vadd.s32 %v2495, 3
    %v2500 = vand.u32 %v2499, 3
    %vm2501 = vcmp.lt.s32.totalorder %v2500, 2
    %vm2502 = vcmp.eq.s32.totalorder %v2500, 0
    %v2503 = vxor.u32 %v2497, 2147483648
    %v2504 = vsel %vm2502, %v2496, %v2503
    %vm2505 = vcmp.eq.s32.totalorder %v2500, 2
    %v2506 = vxor.u32 %v2496, 2147483648
    %v2507 = vsel %vm2505, %v2506, %v2497
    %v2508 = vsel %vm2501, %v2504, %v2507
    %v2509 = vsel %vm2498, nan, %v2508
    %v2510 = vand.u32 2147483647, %v303
    %vm2511 = vcmp.le.f32.partialorder %v2510, 0.7853982
    %vm2512 = vcmp.lt.s32.totalorder %v303, 0
    %v2513 = vand.u32 %v303, 2139095040
    %v2514 = vshrl.u32 %v2513, 23
    %v2515 = vsub.s32 %v2514, 127
    %v2516 = vand.u32 2147483647, %v303
    %v2517 = vand.u32 %v2516, 8388607
    %v2518 = vor.u32 %v2517, 8388608
    %v2519 = vsub.s32 0, %v2518
    %v2520 = vadd.s32 %v2515, 1
    %vm2521 = vcmp.gt.s32.totalorder %v2520, 0
    %v2522 = vsel %vm2521, %v2520, 0
    %v2523 = vshrl.u32 %v2522, 5
    %v2524 = vand.u32 %v2522, 31
    %v2525 = vsub.s32 32, %v2524
    %v2526 = vshrl.u32 683565275, %v2525
    %v2527 = vshll.u32 683565275, %v2524
    %v2528 = vshrl.u32 2475754826, %v2525
    %v2529 = vor.u32 %v2527, %v2528
    %v2530 = vshll.u32 2475754826, %v2524
    %v2531 = vshrl.u32 2131351028, %v2525
    %v2532 = vor.u32 %v2530, %v2531
    %v2533 = vshll.u32 2131351028, %v2524
    %v2534 = vshrl.u32 2102212464, %v2525
    %v2535 = vor.u32 %v2533, %v2534
    %v2536 = vshll.u32 2102212464, %v2524
    %v2537 = vshrl.u32 920167782, %v2525
    %v2538 = vor.u32 %v2536, %v2537
    %v2539 = vshll.u32 920167782, %v2524
    %v2540 = vshrl.u32 1326507024, %v2525
    %v2541 = vor.u32 %v2539, %v2540
    %vm2542 = vcmp.lt.s32.totalorder %v2523, 1
    %vm2543 = vcmp.lt.s32.totalorder %v2523, 2
    %vm2544 = vcmp.lt.s32.totalorder %v2523, 3
    %vm2545 = vcmp.lt.s32.totalorder %v2523, 4
    %v2546 = vsel %vm2542, %v2526, %v2529
    %v2547 = vsel %vm2545, %v2535, 2102212464
    %v2548 = vsel %vm2544, %v2532, %v2547
    %v2549 = vsel %vm2543, %v2546, %v2548
    %v2550 = vsel %vm2542, %v2529, %v2532
    %v2551 = vsel %vm2545, %v2538, 920167782
    %v2552 = vsel %vm2544, %v2535, %v2551
    %v2553 = vsel %vm2543, %v2550, %v2552
    %v2554 = vsel %vm2542, %v2532, %v2535
    %v2555 = vsel %vm2545, %v2541, 1326507024
    %v2556 = vsel %vm2544, %v2538, %v2555
    %v2557 = vsel %vm2543, %v2554, %v2556
    %v2558 = vshll.u32 %v2518, 8
    %v2559 = vmul.u32.u64.compose %v2558, %v2557
    %v2560 = vextract.low.u32 %v2559
    %v2561 = vextract.high.u32 %v2559
    %v2562 = vmul.u32.u64.compose %v2558, %v2553
    %v2563 = vextract.low.u32 %v2562
    %v2564 = vextract.high.u32 %v2562
    %v2565 = vmul.u32 %v2558, %v2549
    %v2566 = vadd.s32 %v2561, %v2563
    %vm2567 = vc.u32 %v2561, %v2563
    %v2568 = vadd.s32 %v2564, 1
    %v2569 = vsel %vm2567, %v2568, %v2564
    %v2570 = vadd.s32 %v2565, %v2569
    %v2571 = vadd.s32 %v2570, 536870912
    %v2572 = vshrl.u32 %v2571, 30
    %v2573 = vshll.u32 %v2572, 30
    %v2574 = vsub.s32 %v2570, %v2573
    %vm2575 = vcmp.lt.s32.totalorder %v2574, 0
    %v2576 = vsub.s32 0, %v2574
    %v2577 = vsel %vm2575, %v2576, %v2574
    %v2578 = vclz %v2577
    %v2579 = vsub.s32 %v2578, 2
    %vm2580 = vcmp.gt.s32.totalorder 0, %v2579
    %v2581 = vsel %vm2580, 0, %v2579
    %v2582 = vsub.s32 32, %v2581
    %v2583 = vshll.u32 %v2574, %v2581
    %v2584 = vshrl.u32 %v2566, %v2582
    %v2585 = vor.u32 %v2583, %v2584
    %v2586 = vsub.s32 4294967266, %v2581
    %v2587 = vadd.s32 %v2586, 127
    %v2588 = vshll.u32 %v2587, 23
    %v2589 = vor.u32 4788187, %v2588
    %v2590 = vand.u32 2147483647, %v2589
    %v2592 = vcvt.s32.f32 %v2585
    %v2593 = vmul.f32 %v2592, %v2590
    %v2594 = vxor.u32 %v2593, 2147483648
    %v2595 = vsel %vm2512, %v2594, %v2593
    %v2596 = vsub.s32 4, %v2572
    %v2597 = vsel %vm2512, %v2596, %v2572
    %v2598 = vsel %vm2511, %v303, %v2595
    %v2599 = vsel %vm2511, 0, %v2597
    %v2600 = vcosq.f32.pop %v2598
    %v2601 = vsinq.f32.pop %v2598
    %vm2602 = vweird.f32 %v303
    %v2603 = vadd.s32 %v2599, 3
    %v2604 = vand.u32 %v2603, 3
    %vm2605 = vcmp.lt.s32.totalorder %v2604, 2
    %vm2606 = vcmp.eq.s32.totalorder %v2604, 0
    %v2607 = vxor.u32 %v2601, 2147483648
    %v2608 = vsel %vm2606, %v2600, %v2607
    %vm2609 = vcmp.eq.s32.totalorder %v2604, 2
    %v2610 = vxor.u32 %v2600, 2147483648
    %v2611 = vsel %vm2609, %v2610, %v2601
    %v2612 = vsel %vm2605, %v2608, %v2611
    %v2613 = vsel %vm2602, nan, %v2612
    %v2614 = vand.u32 2147483647, %v308
    %vm2615 = vcmp.le.f32.partialorder %v2614, 0.7853982
    %vm2616 = vcmp.lt.s32.totalorder %v308, 0
    %v2617 = vand.u32 %v308, 2139095040
    %v2618 = vshrl.u32 %v2617, 23
    %v2619 = vsub.s32 %v2618, 127
    %v2620 = vand.u32 2147483647, %v308
    %v2621 = vand.u32 %v2620, 8388607
    %v2622 = vor.u32 %v2621, 8388608
    %v2623 = vsub.s32 0, %v2622
    %v2624 = vadd.s32 %v2619, 1
    %vm2625 = vcmp.gt.s32.totalorder %v2624, 0
    %v2626 = vsel %vm2625, %v2624, 0
    %v2627 = vshrl.u32 %v2626, 5
    %v2628 = vand.u32 %v2626, 31
    %v2629 = vsub.s32 32, %v2628
    %v2630 = vshrl.u32 683565275, %v2629
    %v2631 = vshll.u32 683565275, %v2628
    %v2632 = vshrl.u32 2475754826, %v2629
    %v2633 = vor.u32 %v2631, %v2632
    %v2634 = vshll.u32 2475754826, %v2628
    %v2635 = vshrl.u32 2131351028, %v2629
    %v2636 = vor.u32 %v2634, %v2635
    %v2637 = vshll.u32 2131351028, %v2628
    %v2638 = vshrl.u32 2102212464, %v2629
    %v2639 = vor.u32 %v2637, %v2638
    %v2640 = vshll.u32 2102212464, %v2628
    %v2641 = vshrl.u32 920167782, %v2629
    %v2642 = vor.u32 %v2640, %v2641
    %v2643 = vshll.u32 920167782, %v2628
    %v2644 = vshrl.u32 1326507024, %v2629
    %v2645 = vor.u32 %v2643, %v2644
    %vm2646 = vcmp.lt.s32.totalorder %v2627, 1
    %vm2647 = vcmp.lt.s32.totalorder %v2627, 2
    %vm2648 = vcmp.lt.s32.totalorder %v2627, 3
    %vm2649 = vcmp.lt.s32.totalorder %v2627, 4
    %v2650 = vsel %vm2646, %v2630, %v2633
    %v2651 = vsel %vm2649, %v2639, 2102212464
    %v2652 = vsel %vm2648, %v2636, %v2651
    %v2653 = vsel %vm2647, %v2650, %v2652
    %v2654 = vsel %vm2646, %v2633, %v2636
    %v2655 = vsel %vm2649, %v2642, 920167782
    %v2656 = vsel %vm2648, %v2639, %v2655
    %v2657 = vsel %vm2647, %v2654, %v2656
    %v2658 = vsel %vm2646, %v2636, %v2639
    %v2659 = vsel %vm2649, %v2645, 1326507024
    %v2660 = vsel %vm2648, %v2642, %v2659
    %v2661 = vsel %vm2647, %v2658, %v2660
    %v2662 = vshll.u32 %v2622, 8
    %v2663 = vmul.u32.u64.compose %v2662, %v2661
    %v2664 = vextract.low.u32 %v2663
    %v2665 = vextract.high.u32 %v2663
    %v2666 = vmul.u32.u64.compose %v2662, %v2657
    %v2667 = vextract.low.u32 %v2666
    %v2668 = vextract.high.u32 %v2666
    %v2669 = vmul.u32 %v2662, %v2653
    %v2670 = vadd.s32 %v2665, %v2667
    %vm2671 = vc.u32 %v2665, %v2667
    %v2672 = vadd.s32 %v2668, 1
    %v2673 = vsel %vm2671, %v2672, %v2668
    %v2674 = vadd.s32 %v2669, %v2673
    %v2675 = vadd.s32 %v2674, 536870912
    %v2676 = vshrl.u32 %v2675, 30
    %v2677 = vshll.u32 %v2676, 30
    %v2678 = vsub.s32 %v2674, %v2677
    %vm2679 = vcmp.lt.s32.totalorder %v2678, 0
    %v2680 = vsub.s32 0, %v2678
    %v2681 = vsel %vm2679, %v2680, %v2678
    %v2682 = vclz %v2681
    %v2683 = vsub.s32 %v2682, 2
    %vm2684 = vcmp.gt.s32.totalorder 0, %v2683
    %v2685 = vsel %vm2684, 0, %v2683
    %v2686 = vsub.s32 32, %v2685
    %v2687 = vshll.u32 %v2678, %v2685
    %v2688 = vshrl.u32 %v2670, %v2686
    %v2689 = vor.u32 %v2687, %v2688
    %v2690 = vsub.s32 4294967266, %v2685
    %v2691 = vadd.s32 %v2690, 127
    %v2692 = vshll.u32 %v2691, 23
    %v2693 = vor.u32 4788187, %v2692
    %v2694 = vand.u32 2147483647, %v2693
    %v2696 = vcvt.s32.f32 %v2689
    %v2697 = vmul.f32 %v2696, %v2694
    %v2698 = vxor.u32 %v2697, 2147483648
    %v2699 = vsel %vm2616, %v2698, %v2697
    %v2700 = vsub.s32 4, %v2676
    %v2701 = vsel %vm2616, %v2700, %v2676
    %v2702 = vsel %vm2615, %v308, %v2699
    %v2703 = vsel %vm2615, 0, %v2701
    %v2704 = vcosq.f32.pop %v2702
    %v2705 = vsinq.f32.pop %v2702
    %vm2706 = vweird.f32 %v308
    %v2707 = vadd.s32 %v2703, 3
    %v2708 = vand.u32 %v2707, 3
    %vm2709 = vcmp.lt.s32.totalorder %v2708, 2
    %vm2710 = vcmp.eq.s32.totalorder %v2708, 0
    %v2711 = vxor.u32 %v2705, 2147483648
    %v2712 = vsel %vm2710, %v2704, %v2711
    %vm2713 = vcmp.eq.s32.totalorder %v2708, 2
    %v2714 = vxor.u32 %v2704, 2147483648
    %v2715 = vsel %vm2713, %v2714, %v2705
    %v2716 = vsel %vm2709, %v2712, %v2715
    %v2717 = vsel %vm2706, nan, %v2716
    %v2718 = vand.u32 2147483647, %v313
    %vm2719 = vcmp.le.f32.partialorder %v2718, 0.7853982
    %vm2720 = vcmp.lt.s32.totalorder %v313, 0
    %v2721 = vand.u32 %v313, 2139095040
    %v2722 = vshrl.u32 %v2721, 23
    %v2723 = vsub.s32 %v2722, 127
    %v2724 = vand.u32 2147483647, %v313
    %v2725 = vand.u32 %v2724, 8388607
    %v2726 = vor.u32 %v2725, 8388608
    %v2727 = vsub.s32 0, %v2726
    %v2728 = vadd.s32 %v2723, 1
    %vm2729 = vcmp.gt.s32.totalorder %v2728, 0
    %v2730 = vsel %vm2729, %v2728, 0
    %v2731 = vshrl.u32 %v2730, 5
    %v2732 = vand.u32 %v2730, 31
    %v2733 = vsub.s32 32, %v2732
    %v2734 = vshrl.u32 683565275, %v2733
    %v2735 = vshll.u32 683565275, %v2732
    %v2736 = vshrl.u32 2475754826, %v2733
    %v2737 = vor.u32 %v2735, %v2736
    %v2738 = vshll.u32 2475754826, %v2732
    %v2739 = vshrl.u32 2131351028, %v2733
    %v2740 = vor.u32 %v2738, %v2739
    %v2741 = vshll.u32 2131351028, %v2732
    %v2742 = vshrl.u32 2102212464, %v2733
    %v2743 = vor.u32 %v2741, %v2742
    %v2744 = vshll.u32 2102212464, %v2732
    %v2745 = vshrl.u32 920167782, %v2733
    %v2746 = vor.u32 %v2744, %v2745
    %v2747 = vshll.u32 920167782, %v2732
    %v2748 = vshrl.u32 1326507024, %v2733
    %v2749 = vor.u32 %v2747, %v2748
    %vm2750 = vcmp.lt.s32.totalorder %v2731, 1
    %vm2751 = vcmp.lt.s32.totalorder %v2731, 2
    %vm2752 = vcmp.lt.s32.totalorder %v2731, 3
    %vm2753 = vcmp.lt.s32.totalorder %v2731, 4
    %v2754 = vsel %vm2750, %v2734, %v2737
    %v2755 = vsel %vm2753, %v2743, 2102212464
    %v2756 = vsel %vm2752, %v2740, %v2755
    %v2757 = vsel %vm2751, %v2754, %v2756
    %v2758 = vsel %vm2750, %v2737, %v2740
    %v2759 = vsel %vm2753, %v2746, 920167782
    %v2760 = vsel %vm2752, %v2743, %v2759
    %v2761 = vsel %vm2751, %v2758, %v2760
    %v2762 = vsel %vm2750, %v2740, %v2743
    %v2763 = vsel %vm2753, %v2749, 1326507024
    %v2764 = vsel %vm2752, %v2746, %v2763
    %v2765 = vsel %vm2751, %v2762, %v2764
    %v2766 = vshll.u32 %v2726, 8
    %v2767 = vmul.u32.u64.compose %v2766, %v2765
    %v2768 = vextract.low.u32 %v2767
    %v2769 = vextract.high.u32 %v2767
    %v2770 = vmul.u32.u64.compose %v2766, %v2761
    %v2771 = vextract.low.u32 %v2770
    %v2772 = vextract.high.u32 %v2770
    %v2773 = vmul.u32 %v2766, %v2757
    %v2774 = vadd.s32 %v2769, %v2771
    %vm2775 = vc.u32 %v2769, %v2771
    %v2776 = vadd.s32 %v2772, 1
    %v2777 = vsel %vm2775, %v2776, %v2772
    %v2778 = vadd.s32 %v2773, %v2777
    %v2779 = vadd.s32 %v2778, 536870912
    %v2780 = vshrl.u32 %v2779, 30
    %v2781 = vshll.u32 %v2780, 30
    %v2782 = vsub.s32 %v2778, %v2781
    %vm2783 = vcmp.lt.s32.totalorder %v2782, 0
    %v2784 = vsub.s32 0, %v2782
    %v2785 = vsel %vm2783, %v2784, %v2782
    %v2786 = vclz %v2785
    %v2787 = vsub.s32 %v2786, 2
    %vm2788 = vcmp.gt.s32.totalorder 0, %v2787
    %v2789 = vsel %vm2788, 0, %v2787
    %v2790 = vsub.s32 32, %v2789
    %v2791 = vshll.u32 %v2782, %v2789
    %v2792 = vshrl.u32 %v2774, %v2790
    %v2793 = vor.u32 %v2791, %v2792
    %v2794 = vsub.s32 4294967266, %v2789
    %v2795 = vadd.s32 %v2794, 127
    %v2796 = vshll.u32 %v2795, 23
    %v2797 = vor.u32 4788187, %v2796
    %v2798 = vand.u32 2147483647, %v2797
    %v2800 = vcvt.s32.f32 %v2793
    %v2801 = vmul.f32 %v2800, %v2798
    %v2802 = vxor.u32 %v2801, 2147483648
    %v2803 = vsel %vm2720, %v2802, %v2801
    %v2804 = vsub.s32 4, %v2780
    %v2805 = vsel %vm2720, %v2804, %v2780
    %v2806 = vsel %vm2719, %v313, %v2803
    %v2807 = vsel %vm2719, 0, %v2805
    %v2808 = vcosq.f32.pop %v2806
    %v2809 = vsinq.f32.pop %v2806
    %vm2810 = vweird.f32 %v313
    %v2811 = vadd.s32 %v2807, 3
    %v2812 = vand.u32 %v2811, 3
    %vm2813 = vcmp.lt.s32.totalorder %v2812, 2
    %vm2814 = vcmp.eq.s32.totalorder %v2812, 0
    %v2815 = vxor.u32 %v2809, 2147483648
    %v2816 = vsel %vm2814, %v2808, %v2815
    %vm2817 = vcmp.eq.s32.totalorder %v2812, 2
    %v2818 = vxor.u32 %v2808, 2147483648
    %v2819 = vsel %vm2817, %v2818, %v2809
    %v2820 = vsel %vm2813, %v2816, %v2819
    %v2821 = vsel %vm2810, nan, %v2820
    %v2822 = vand.u32 2147483647, %v318
    %vm2823 = vcmp.le.f32.partialorder %v2822, 0.7853982
    %vm2824 = vcmp.lt.s32.totalorder %v318, 0
    %v2825 = vand.u32 %v318, 2139095040
    %v2826 = vshrl.u32 %v2825, 23
    %v2827 = vsub.s32 %v2826, 127
    %v2828 = vand.u32 2147483647, %v318
    %v2829 = vand.u32 %v2828, 8388607
    %v2830 = vor.u32 %v2829, 8388608
    %v2831 = vsub.s32 0, %v2830
    %v2832 = vadd.s32 %v2827, 1
    %vm2833 = vcmp.gt.s32.totalorder %v2832, 0
    %v2834 = vsel %vm2833, %v2832, 0
    %v2835 = vshrl.u32 %v2834, 5
    %v2836 = vand.u32 %v2834, 31
    %v2837 = vsub.s32 32, %v2836
    %v2838 = vshrl.u32 683565275, %v2837
    %v2839 = vshll.u32 683565275, %v2836
    %v2840 = vshrl.u32 2475754826, %v2837
    %v2841 = vor.u32 %v2839, %v2840
    %v2842 = vshll.u32 2475754826, %v2836
    %v2843 = vshrl.u32 2131351028, %v2837
    %v2844 = vor.u32 %v2842, %v2843
    %v2845 = vshll.u32 2131351028, %v2836
    %v2846 = vshrl.u32 2102212464, %v2837
    %v2847 = vor.u32 %v2845, %v2846
    %v2848 = vshll.u32 2102212464, %v2836
    %v2849 = vshrl.u32 920167782, %v2837
    %v2850 = vor.u32 %v2848, %v2849
    %v2851 = vshll.u32 920167782, %v2836
    %v2852 = vshrl.u32 1326507024, %v2837
    %v2853 = vor.u32 %v2851, %v2852
    %vm2854 = vcmp.lt.s32.totalorder %v2835, 1
    %vm2855 = vcmp.lt.s32.totalorder %v2835, 2
    %vm2856 = vcmp.lt.s32.totalorder %v2835, 3
    %vm2857 = vcmp.lt.s32.totalorder %v2835, 4
    %v2858 = vsel %vm2854, %v2838, %v2841
    %v2859 = vsel %vm2857, %v2847, 2102212464
    %v2860 = vsel %vm2856, %v2844, %v2859
    %v2861 = vsel %vm2855, %v2858, %v2860
    %v2862 = vsel %vm2854, %v2841, %v2844
    %v2863 = vsel %vm2857, %v2850, 920167782
    %v2864 = vsel %vm2856, %v2847, %v2863
    %v2865 = vsel %vm2855, %v2862, %v2864
    %v2866 = vsel %vm2854, %v2844, %v2847
    %v2867 = vsel %vm2857, %v2853, 1326507024
    %v2868 = vsel %vm2856, %v2850, %v2867
    %v2869 = vsel %vm2855, %v2866, %v2868
    %v2870 = vshll.u32 %v2830, 8
    %v2871 = vmul.u32.u64.compose %v2870, %v2869
    %v2872 = vextract.low.u32 %v2871
    %v2873 = vextract.high.u32 %v2871
    %v2874 = vmul.u32.u64.compose %v2870, %v2865
    %v2875 = vextract.low.u32 %v2874
    %v2876 = vextract.high.u32 %v2874
    %v2877 = vmul.u32 %v2870, %v2861
    %v2878 = vadd.s32 %v2873, %v2875
    %vm2879 = vc.u32 %v2873, %v2875
    %v2880 = vadd.s32 %v2876, 1
    %v2881 = vsel %vm2879, %v2880, %v2876
    %v2882 = vadd.s32 %v2877, %v2881
    %v2883 = vadd.s32 %v2882, 536870912
    %v2884 = vshrl.u32 %v2883, 30
    %v2885 = vshll.u32 %v2884, 30
    %v2886 = vsub.s32 %v2882, %v2885
    %vm2887 = vcmp.lt.s32.totalorder %v2886, 0
    %v2888 = vsub.s32 0, %v2886
    %v2889 = vsel %vm2887, %v2888, %v2886
    %v2890 = vclz %v2889
    %v2891 = vsub.s32 %v2890, 2
    %vm2892 = vcmp.gt.s32.totalorder 0, %v2891
    %v2893 = vsel %vm2892, 0, %v2891
    %v2894 = vsub.s32 32, %v2893
    %v2895 = vshll.u32 %v2886, %v2893
    %v2896 = vshrl.u32 %v2878, %v2894
    %v2897 = vor.u32 %v2895, %v2896
    %v2898 = vsub.s32 4294967266, %v2893
    %v2899 = vadd.s32 %v2898, 127
    %v2900 = vshll.u32 %v2899, 23
    %v2901 = vor.u32 4788187, %v2900
    %v2902 = vand.u32 2147483647, %v2901
    %v2904 = vcvt.s32.f32 %v2897
    %v2905 = vmul.f32 %v2904, %v2902
    %v2906 = vxor.u32 %v2905, 2147483648
    %v2907 = vsel %vm2824, %v2906, %v2905
    %v2908 = vsub.s32 4, %v2884
    %v2909 = vsel %vm2824, %v2908, %v2884
    %v2910 = vsel %vm2823, %v318, %v2907
    %v2911 = vsel %vm2823, 0, %v2909
    %v2912 = vcosq.f32.pop %v2910
    %v2913 = vsinq.f32.pop %v2910
    %vm2914 = vweird.f32 %v318
    %v2915 = vadd.s32 %v2911, 3
    %v2916 = vand.u32 %v2915, 3
    %vm2917 = vcmp.lt.s32.totalorder %v2916, 2
    %vm2918 = vcmp.eq.s32.totalorder %v2916, 0
    %v2919 = vxor.u32 %v2913, 2147483648
    %v2920 = vsel %vm2918, %v2912, %v2919
    %vm2921 = vcmp.eq.s32.totalorder %v2916, 2
    %v2922 = vxor.u32 %v2912, 2147483648
    %v2923 = vsel %vm2921, %v2922, %v2913
    %v2924 = vsel %vm2917, %v2920, %v2923
    %v2925 = vsel %vm2914, nan, %v2924
    %v2926 = vand.u32 2147483647, %v323
    %vm2927 = vcmp.le.f32.partialorder %v2926, 0.7853982
    %vm2928 = vcmp.lt.s32.totalorder %v323, 0
    %v2929 = vand.u32 %v323, 2139095040
    %v2930 = vshrl.u32 %v2929, 23
    %v2931 = vsub.s32 %v2930, 127
    %v2932 = vand.u32 2147483647, %v323
    %v2933 = vand.u32 %v2932, 8388607
    %v2934 = vor.u32 %v2933, 8388608
    %v2935 = vsub.s32 0, %v2934
    %v2936 = vadd.s32 %v2931, 1
    %vm2937 = vcmp.gt.s32.totalorder %v2936, 0
    %v2938 = vsel %vm2937, %v2936, 0
    %v2939 = vshrl.u32 %v2938, 5
    %v2940 = vand.u32 %v2938, 31
    %v2941 = vsub.s32 32, %v2940
    %v2942 = vshrl.u32 683565275, %v2941
    %v2943 = vshll.u32 683565275, %v2940
    %v2944 = vshrl.u32 2475754826, %v2941
    %v2945 = vor.u32 %v2943, %v2944
    %v2946 = vshll.u32 2475754826, %v2940
    %v2947 = vshrl.u32 2131351028, %v2941
    %v2948 = vor.u32 %v2946, %v2947
    %v2949 = vshll.u32 2131351028, %v2940
    %v2950 = vshrl.u32 2102212464, %v2941
    %v2951 = vor.u32 %v2949, %v2950
    %v2952 = vshll.u32 2102212464, %v2940
    %v2953 = vshrl.u32 920167782, %v2941
    %v2954 = vor.u32 %v2952, %v2953
    %v2955 = vshll.u32 920167782, %v2940
    %v2956 = vshrl.u32 1326507024, %v2941
    %v2957 = vor.u32 %v2955, %v2956
    %vm2958 = vcmp.lt.s32.totalorder %v2939, 1
    %vm2959 = vcmp.lt.s32.totalorder %v2939, 2
    %vm2960 = vcmp.lt.s32.totalorder %v2939, 3
    %vm2961 = vcmp.lt.s32.totalorder %v2939, 4
    %v2962 = vsel %vm2958, %v2942, %v2945
    %v2963 = vsel %vm2961, %v2951, 2102212464
    %v2964 = vsel %vm2960, %v2948, %v2963
    %v2965 = vsel %vm2959, %v2962, %v2964
    %v2966 = vsel %vm2958, %v2945, %v2948
    %v2967 = vsel %vm2961, %v2954, 920167782
    %v2968 = vsel %vm2960, %v2951, %v2967
    %v2969 = vsel %vm2959, %v2966, %v2968
    %v2970 = vsel %vm2958, %v2948, %v2951
    %v2971 = vsel %vm2961, %v2957, 1326507024
    %v2972 = vsel %vm2960, %v2954, %v2971
    %v2973 = vsel %vm2959, %v2970, %v2972
    %v2974 = vshll.u32 %v2934, 8
    %v2975 = vmul.u32.u64.compose %v2974, %v2973
    %v2976 = vextract.low.u32 %v2975
    %v2977 = vextract.high.u32 %v2975
    %v2978 = vmul.u32.u64.compose %v2974, %v2969
    %v2979 = vextract.low.u32 %v2978
    %v2980 = vextract.high.u32 %v2978
    %v2981 = vmul.u32 %v2974, %v2965
    %v2982 = vadd.s32 %v2977, %v2979
    %vm2983 = vc.u32 %v2977, %v2979
    %v2984 = vadd.s32 %v2980, 1
    %v2985 = vsel %vm2983, %v2984, %v2980
    %v2986 = vadd.s32 %v2981, %v2985
    %v2987 = vadd.s32 %v2986, 536870912
    %v2988 = vshrl.u32 %v2987, 30
    %v2989 = vshll.u32 %v2988, 30
    %v2990 = vsub.s32 %v2986, %v2989
    %vm2991 = vcmp.lt.s32.totalorder %v2990, 0
    %v2992 = vsub.s32 0, %v2990
    %v2993 = vsel %vm2991, %v2992, %v2990
    %v2994 = vclz %v2993
    %v2995 = vsub.s32 %v2994, 2
    %vm2996 = vcmp.gt.s32.totalorder 0, %v2995
    %v2997 = vsel %vm2996, 0, %v2995
    %v2998 = vsub.s32 32, %v2997
    %v2999 = vshll.u32 %v2990, %v2997
    %v3000 = vshrl.u32 %v2982, %v2998
    %v3001 = vor.u32 %v2999, %v3000
    %v3002 = vsub.s32 4294967266, %v2997
    %v3003 = vadd.s32 %v3002, 127
    %v3004 = vshll.u32 %v3003, 23
    %v3005 = vor.u32 4788187, %v3004
    %v3006 = vand.u32 2147483647, %v3005
    %v3008 = vcvt.s32.f32 %v3001
    %v3009 = vmul.f32 %v3008, %v3006
    %v3010 = vxor.u32 %v3009, 2147483648
    %v3011 = vsel %vm2928, %v3010, %v3009
    %v3012 = vsub.s32 4, %v2988
    %v3013 = vsel %vm2928, %v3012, %v2988
    %v3014 = vsel %vm2927, %v323, %v3011
    %v3015 = vsel %vm2927, 0, %v3013
    %v3016 = vcosq.f32.pop %v3014
    %v3017 = vsinq.f32.pop %v3014
    %vm3018 = vweird.f32 %v323
    %v3019 = vadd.s32 %v3015, 3
    %v3020 = vand.u32 %v3019, 3
    %vm3021 = vcmp.lt.s32.totalorder %v3020, 2
    %vm3022 = vcmp.eq.s32.totalorder %v3020, 0
    %v3023 = vxor.u32 %v3017, 2147483648
    %v3024 = vsel %vm3022, %v3016, %v3023
    %vm3025 = vcmp.eq.s32.totalorder %v3020, 2
    %v3026 = vxor.u32 %v3016, 2147483648
    %v3027 = vsel %vm3025, %v3026, %v3017
    %v3028 = vsel %vm3021, %v3024, %v3027
    %v3029 = vsel %vm3018, nan, %v3028
    %3030 = vst [vmem:[#allocation2] sm:$0xff] %v429
    %3031 = vst [vmem:[#allocation2 + $0x8] sm:$0xff] %v533
    %3032 = vst [vmem:[#allocation2 + $0x10] sm:$0xff] %v637
    %3033 = vst [vmem:[#allocation2 + $0x18] sm:$0xff] %v741
    %3034 = vst [vmem:[#allocation2 + $0x20] sm:$0xff] %v845
    %3035 = vst [vmem:[#allocation2 + $0x28] sm:$0xff] %v949
    %3036 = vst [vmem:[#allocation2 + $0x30] sm:$0xff] %v1053
    %3037 = vst [vmem:[#allocation2 + $0x38] sm:$0xff] %v1157
    %3038 = vst [vmem:[#allocation2 + $0x40] sm:$0xff] %v1261
    %3039 = vst [vmem:[#allocation2 + $0x48] sm:$0xff] %v1365
    %3040 = vst [vmem:[#allocation2 + $0x50] sm:$0xff] %v1469
    %3041 = vst [vmem:[#allocation2 + $0x58] sm:$0xff] %v1573
    %3042 = vst [vmem:[#allocation2 + $0x60] sm:$0xff] %v1677
    %3043 = vst [vmem:[#allocation2 + $0x68] sm:$0xff] %v1781
    %3044 = vst [vmem:[#allocation2 + $0x70] sm:$0xff] %v1885
    %3045 = vst [vmem:[#allocation2 + $0x78] sm:$0xff] %v1989
    %3046 = vst [vmem:[#allocation2 + $0x80] sm:$0xff] %v2093
    %3047 = vst [vmem:[#allocation2 + $0x88] sm:$0xff] %v2197
    %3048 = vst [vmem:[#allocation2 + $0x90] sm:$0xff] %v2301
    %3049 = vst [vmem:[#allocation2 + $0x98] sm:$0xff] %v2405
    %3050 = vst [vmem:[#allocation2 + $0xa0] sm:$0xff] %v2509
    %3051 = vst [vmem:[#allocation2 + $0xa8] sm:$0xff] %v2613
    %3052 = vst [vmem:[#allocation2 + $0xb0] sm:$0xff] %v2717
    %3053 = vst [vmem:[#allocation2 + $0xb8] sm:$0xff] %v2821
    %3054 = vst [vmem:[#allocation2 + $0xc0] sm:$0xff] %v2925
    %3055 = vst [vmem:[#allocation2 + $0xc8] sm:$0xff] %v3029
    // Predicated region
    $region14: #{tpu_custom_call.1} parent=1 // pred_check
      _
    $region15: #{tpu_custom_call.1} parent=1 // pred_check_branch
      %3057 = sbr.rel (0) target = $region17
    $region16: #{tpu_custom_call.1} parent=1 // pred_region
      %s3059 = ssub.s32 3328, 3328
      %3060 = vsyncadd [#allocation3], %s3059
      %s3061 = sshll.u32 [#allocation2], 4
      %s3062 = int_to_ptr.vmem [resolvable:$true] %s3061
      %3067 = dma.vmem_to_hbm [thread:$0]  %s3062, 3328, %s3, [#allocation3], 128, 128, 8
    $region17: #{tpu_custom_call.1} parent=1 // pred_fallthru
      _
    // Predicated region
    $region18: #{tpu_custom_call.1} parent=1 // pred_check
      _
    $region19: #{tpu_custom_call.1} parent=1 // pred_check_branch
      %3069 = sbr.rel (0) target = $region21
    $region20: #{tpu_custom_call.1} parent=1 // pred_region
      %3070 = dma.done [#allocation3], 3328
    $region21: #{tpu_custom_call.1} parent=1 // pred_fallthru
      _
    %3071 = vsyncpa [#allocation3], 1

</llo_original>
